<compile_context>
chip_gen: v7x
topology: tpu7x:2x2x1
jax: 0.10.0
libtpu: 0.0.40
codegen_flags: <defaults>
</compile_context>

<pallas_src>
import jax
import jax.numpy as jnp
from jax.experimental import pallas as pl
from jax.experimental.pallas import tpu as pltpu

_EPS = 1e-5
_K_IN = 960  # MobileNetV3-Large pooled feature dim


def _round_up(x, m):
    return ((x + m - 1) // m) * m


def _choose_tiling(B):
    """Pick (batch tile, grid steps).

    Multi-step tiles are multiples of 128 so the lane-dense (8, tile_b)
    output blocks stay unmasked; single-step tiles are multiples of 16 for
    bf16 sublane packing.  For B >= 256 we force >= 2 steps so the
    'parallel' grid axis can shard across both v7x TensorCores.
    """
    if B < 256:
        return max(16, _round_up(B, 16)), 1
    best = None
    for tile in (512, 384, 256, 128):
        n = -(-B // tile)
        if n < 2:
            continue
        key = (n * tile, n)  # minimize padded rows first, then grid steps
        if best is None or key < best[0]:
            best = (key, tile, n)
    _, tile, n = best
    return tile, n


# ---------------------------------------------------------------------------
# Kernel
# ---------------------------------------------------------------------------
def _mlp_head_kernel(x_ref,
                     w1_ref, s1_ref, c1_ref,
                     w2_ref, s2_ref, c2_ref,
                     w3_ref, s3_ref, c3_ref,
                     w4t_ref, c4_ref,
                     o_ref):
    """(int8 weight dequant -> bf16 dot -> col-scale + shift -> relu) x3,
    then fc4 as a transposed 1-row matmul producing a lane-dense block."""

    def dequant(ref):
        # int8 -> f32 -> bf16 (all int8 values are exact in bf16).
        return ref[...].astype(jnp.float32).astype(jnp.bfloat16)

    xb = x_ref[...].astype(jnp.bfloat16)  # cast fused into the kernel (VPU)

    h = jnp.dot(xb, dequant(w1_ref), preferred_element_type=jnp.float32)
    h = jnp.maximum(h * s1_ref[...] + c1_ref[...], 0.0)

    h = jnp.dot(h.astype(jnp.bfloat16), dequant(w2_ref),
                preferred_element_type=jnp.float32)
    h = jnp.maximum(h * s2_ref[...] + c2_ref[...], 0.0)

    h = jnp.dot(h.astype(jnp.bfloat16), dequant(w3_ref),
                preferred_element_type=jnp.float32)
    h = jnp.maximum(h * s3_ref[...] + c3_ref[...], 0.0)

    # fc4: out[o, b] = sum_k w4t[o, k] * h[b, k]; only row o=0 is real.
    out8 = jnp.einsum("ok,bk->ob", w4t_ref[...], h.astype(jnp.bfloat16),
                      preferred_element_type=jnp.float32)
    o_ref[...] = (out8 + c4_ref[...]).astype(o_ref.dtype)


# ---------------------------------------------------------------------------
# Wrapper
# ---------------------------------------------------------------------------
@jax.jit
def custom_model_head(x, kp):
    """x: [B, 960] f32 pooled MobileNet features -> [B, 1] f32."""
    B = x.shape[0]
    tile_b, n_steps = _choose_tiling(B)
    Bp = tile_b * n_steps
    if Bp != B:  # row padding only (no dtype cast, no feature-dim pad)
        x = jnp.pad(x, ((0, Bp - B), (0, 0)))

    def const(a):
        # Whole-array block, same block every grid step -> VMEM resident.
        return pl.BlockSpec(a.shape, lambda i: (0, 0))

    in_specs = [pl.BlockSpec((tile_b, _K_IN), lambda i: (i, 0))] + [
        const(kp[k]) for k in ("w1", "s1", "c1", "w2", "s2", "c2",
                               "w3", "s3", "c3", "w4t", "c4")
    ]

    out = pl.pallas_call(
        _mlp_head_kernel,
        out_shape=jax.ShapeDtypeStruct((8, Bp), jnp.float32),
        grid=(n_steps,),
        in_specs=in_specs,
        out_specs=pl.BlockSpec((8, tile_b), lambda i: (0, i)),
        compiler_params=pltpu.CompilerParams(
            dimension_semantics=("parallel",),
            vmem_limit_bytes=32 << 20,
        ),
    )(x, kp["w1"], kp["s1"], kp["c1"], kp["w2"], kp["s2"], kp["c2"],
      kp["w3"], kp["s3"], kp["c3"], kp["w4t"], kp["c4"])

    # Real result is row 0 of the lane-dense slab, first B columns.
    return out[0, :B].reshape(B, 1)


# ---------------------------------------------------------------------------
# Parameters: raw (torch-equivalent, f32) and folded kernel operands
# ---------------------------------------------------------------------------
def init_raw_params(key):
    """Torch-equivalent params: Linear weights [in, out], eval-mode BN stats."""
    dims = [(960, 512), (512, 256), (256, 128), (128, 1)]
    params = {}
    keys = iter(jax.random.split(key, 32))
    for idx, (fin, fout) in enumerate(dims, start=1):
        bound = fin ** -0.5
        params[f"w{idx}"] = jax.random.uniform(next(keys), (fin, fout),
                                               jnp.float32, -bound, bound)
        params[f"b{idx}"] = jax.random.uniform(next(keys), (fout,),
                                               jnp.float32, -bound, bound)
        if idx <= 3:  # bn1, bn2, bn3 (eval mode)
            params[f"gamma{idx}"] = jax.random.uniform(next(keys), (fout,),
                                                       jnp.float32, 0.5, 1.5)
            params[f"beta{idx}"] = jax.random.uniform(next(keys), (fout,),
                                                      jnp.float32, -0.1, 0.1)
            params[f"mean{idx}"] = 0.1 * jax.random.normal(next(keys), (fout,),
                                                           jnp.float32)
            params[f"var{idx}"] = jax.random.uniform(next(keys), (fout,),
                                                     jnp.float32, 0.5, 1.5)
    return params


def fold_params(raw):
    """Fold bias + eval-mode BN into per-layer (int8 weight, scale, shift).

    Layer i<=3:  y = relu((x @ W + b) * s_bn + t)
               = relu((x @ Wq) * s_col + c)
      with  W' = W * s_bn (column-wise),  Wq = round(W'/s_col) int8,
            s_col = max|W'_col| / 127,    c = b * s_bn + t.
    Layer 4:     y = x @ W4 + b4, stored transposed+padded as [8,128] bf16.
    """
    kp = {}
    for i in (1, 2, 3):
        s_bn = raw[f"gamma{i}"] / jnp.sqrt(raw[f"var{i}"] + _EPS)
        t = raw[f"beta{i}"] - raw[f"mean{i}"] * s_bn
        w = raw[f"w{i}"] * s_bn[None, :]
        c = raw[f"b{i}"] * s_bn + t
        amax = jnp.maximum(jnp.max(jnp.abs(w), axis=0), 1e-12)
        scale = amax / 127.0
        wq = jnp.clip(jnp.round(w / scale[None, :]), -127, 127).astype(jnp.int8)
        kp[f"w{i}"] = wq
        kp[f"s{i}"] = scale.reshape(1, -1).astype(jnp.float32)
        kp[f"c{i}"] = c.reshape(1, -1).astype(jnp.float32)

    w4t = jnp.zeros((8, 128), jnp.float32).at[0, :].set(raw["w4"][:, 0])
    kp["w4t"] = w4t.astype(jnp.bfloat16)
    kp["c4"] = raw["b4"].reshape(1, 1).astype(jnp.float32)
    return kp


# ---------------------------------------------------------------------------
# References
# ---------------------------------------------------------------------------
def reference_head_f32(x, raw):
    """Pure f32 JAX reference of the torch head (eval mode)."""
    h = x
    for i in (1, 2, 3):
        h = h @ raw[f"w{i}"] + raw[f"b{i}"]
        s = raw[f"gamma{i}"] / jnp.sqrt(raw[f"var{i}"] + _EPS)
        t = raw[f"beta{i}"] - raw[f"mean{i}"] * s
        h = jnp.maximum(h * s + t, 0.0)
    return h @ raw["w4"] + raw["b4"]


def reference_head_folded(x, kp):
    """JAX reference using the exact quantized operands the kernel sees."""
    h = x.astype(jnp.bfloat16)
    for i in (1, 2, 3):
        wq = kp[f"w{i}"].astype(jnp.float32).astype(jnp.bfloat16)
        a = jnp.dot(h, wq, preferred_element_type=jnp.float32)
        a = jnp.maximum(a * kp[f"s{i}"] + kp[f"c{i}"], 0.0)
        h = a.astype(jnp.bfloat16)
    out8 = jnp.einsum("ok,bk->ob", kp["w4t"], h,
                      preferred_element_type=jnp.float32) + kp["c4"]
    return out8[0].reshape(-1, 1)


if __name__ == "__main__":
    key = jax.random.PRNGKey(0)
    k_params, k_x = jax.random.split(key)

    raw = init_raw_params(k_params)
    kp = fold_params(raw)

    # Batch of 2 MobileNetV3-Large pooled feature vectors (960-d).
    x = jax.random.normal(k_x, (2, 960), jnp.float32)

    y = jax.block_until_ready(custom_model_head(x, kp))
    assert y.shape == (2, 1), y.shape

    # Tight check vs. a reference using the same quantized operands.
    y_folded = reference_head_folded(x, kp)
    assert jnp.allclose(y, y_folded, atol=2e-2, rtol=2e-2), (y, y_folded)

    # Loose check vs. the full-f32 torch-equivalent math.
    y_f32 = reference_head_f32(x, raw)
    assert jnp.allclose(y, y_f32, atol=2e-1, rtol=2e-1), (y, y_f32)

    print("KERNEL_OK")
</pallas_src>

<mosaic_0001>
module attributes {stable_mosaic.version = 11 : i64} {
  func.func @_mlp_head_kernel(%arg0: i32, %arg1: memref<16x960xf32, #tpu.memory_space<vmem>>, %arg2: memref<960x512xi8, #tpu.memory_space<vmem>>, %arg3: memref<1x512xf32, #tpu.memory_space<vmem>>, %arg4: memref<1x512xf32, #tpu.memory_space<vmem>>, %arg5: memref<512x256xi8, #tpu.memory_space<vmem>>, %arg6: memref<1x256xf32, #tpu.memory_space<vmem>>, %arg7: memref<1x256xf32, #tpu.memory_space<vmem>>, %arg8: memref<256x128xi8, #tpu.memory_space<vmem>>, %arg9: memref<1x128xf32, #tpu.memory_space<vmem>>, %arg10: memref<1x128xf32, #tpu.memory_space<vmem>>, %arg11: memref<8x128xbf16, #tpu.memory_space<vmem>>, %arg12: memref<1x1xf32, #tpu.memory_space<vmem>>, %arg13: memref<8x16xf32, #tpu.memory_space<vmem>>) attributes {dimension_semantics = [#tpu.dimension_semantics<parallel>], iteration_bounds = array<i64: 1>, scalar_prefetch = 0 : i64, scratch_operands = 0 : i64, tpu.core_type = #tpu.core_type<tc>, window_params = [{transform_indices = @transform_0, window_bounds = array<i64: 16, 960>}, {pipeline_mode = #tpu.pipeline_mode<synchronous>, transform_indices = @transform_1, window_bounds = array<i64: 960, 512>}, {pipeline_mode = #tpu.pipeline_mode<synchronous>, transform_indices = @transform_2, window_bounds = array<i64: 1, 512>}, {pipeline_mode = #tpu.pipeline_mode<synchronous>, transform_indices = @transform_3, window_bounds = array<i64: 1, 512>}, {pipeline_mode = #tpu.pipeline_mode<synchronous>, transform_indices = @transform_4, window_bounds = array<i64: 512, 256>}, {pipeline_mode = #tpu.pipeline_mode<synchronous>, transform_indices = @transform_5, window_bounds = array<i64: 1, 256>}, {pipeline_mode = #tpu.pipeline_mode<synchronous>, transform_indices = @transform_6, window_bounds = array<i64: 1, 256>}, {pipeline_mode = #tpu.pipeline_mode<synchronous>, transform_indices = @transform_7, window_bounds = array<i64: 256, 128>}, {pipeline_mode = #tpu.pipeline_mode<synchronous>, transform_indices = @transform_8, window_bounds = array<i64: 1, 128>}, {pipeline_mode = #tpu.pipeline_mode<synchronous>, transform_indices = @transform_9, window_bounds = array<i64: 1, 128>}, {pipeline_mode = #tpu.pipeline_mode<synchronous>, transform_indices = @transform_10, window_bounds = array<i64: 8, 128>}, {pipeline_mode = #tpu.pipeline_mode<synchronous>, transform_indices = @transform_11, window_bounds = array<i64: 1, 1>}, {transform_indices = @transform_12, window_bounds = array<i64: 8, 16>}]} {
    %c0 = arith.constant 0 : index
    %c0_0 = arith.constant 0 : index
    %0 = vector.load %arg1[%c0, %c0_0] : memref<16x960xf32, #tpu.memory_space<vmem>>, vector<16x960xf32>
    %1 = arith.truncf %0 : vector<16x960xf32> to vector<16x960xbf16>
    %c0_1 = arith.constant 0 : index
    %c0_2 = arith.constant 0 : index
    %2 = vector.load %arg2[%c0_1, %c0_2] : memref<960x512xi8, #tpu.memory_space<vmem>>, vector<960x512xi8>
    %3 = arith.sitofp %2 : vector<960x512xi8> to vector<960x512xf32>
    %4 = arith.truncf %3 : vector<960x512xf32> to vector<960x512xbf16>
    %cst = arith.constant dense<0.000000e+00> : vector<16x512xf32>
    %5 = tpu.matmul %1, %4, %cst {dimension_numbers = #tpu.dot_dimension_numbers<[1], [0], [0], [1], [0, 0, 1, 1], [], []>} : vector<16x960xbf16>, vector<960x512xbf16>, vector<16x512xf32> -> vector<16x512xf32>
    %c0_3 = arith.constant 0 : index
    %c0_4 = arith.constant 0 : index
    %6 = vector.load %arg3[%c0_3, %c0_4] : memref<1x512xf32, #tpu.memory_space<vmem>>, vector<1x512xf32>
    %7 = vector.broadcast %6 : vector<1x512xf32> to vector<16x512xf32>
    %8 = arith.mulf %5, %7 : vector<16x512xf32>
    %c0_5 = arith.constant 0 : index
    %c0_6 = arith.constant 0 : index
    %9 = vector.load %arg4[%c0_5, %c0_6] : memref<1x512xf32, #tpu.memory_space<vmem>>, vector<1x512xf32>
    %10 = vector.broadcast %9 : vector<1x512xf32> to vector<16x512xf32>
    %11 = arith.addf %8, %10 : vector<16x512xf32>
    %cst_7 = arith.constant 0.000000e+00 : f32
    %12 = vector.broadcast %cst_7 : f32 to vector<16x512xf32>
    %13 = arith.maximumf %11, %12 : vector<16x512xf32>
    %14 = arith.truncf %13 : vector<16x512xf32> to vector<16x512xbf16>
    %c0_8 = arith.constant 0 : index
    %c0_9 = arith.constant 0 : index
    %15 = vector.load %arg5[%c0_8, %c0_9] : memref<512x256xi8, #tpu.memory_space<vmem>>, vector<512x256xi8>
    %16 = arith.sitofp %15 : vector<512x256xi8> to vector<512x256xf32>
    %17 = arith.truncf %16 : vector<512x256xf32> to vector<512x256xbf16>
    %cst_10 = arith.constant dense<0.000000e+00> : vector<16x256xf32>
    %18 = tpu.matmul %14, %17, %cst_10 {dimension_numbers = #tpu.dot_dimension_numbers<[1], [0], [0], [1], [0, 0, 1, 1], [], []>} : vector<16x512xbf16>, vector<512x256xbf16>, vector<16x256xf32> -> vector<16x256xf32>
    %c0_11 = arith.constant 0 : index
    %c0_12 = arith.constant 0 : index
    %19 = vector.load %arg6[%c0_11, %c0_12] : memref<1x256xf32, #tpu.memory_space<vmem>>, vector<1x256xf32>
    %20 = vector.broadcast %19 : vector<1x256xf32> to vector<16x256xf32>
    %21 = arith.mulf %18, %20 : vector<16x256xf32>
    %c0_13 = arith.constant 0 : index
    %c0_14 = arith.constant 0 : index
    %22 = vector.load %arg7[%c0_13, %c0_14] : memref<1x256xf32, #tpu.memory_space<vmem>>, vector<1x256xf32>
    %23 = vector.broadcast %22 : vector<1x256xf32> to vector<16x256xf32>
    %24 = arith.addf %21, %23 : vector<16x256xf32>
    %cst_15 = arith.constant 0.000000e+00 : f32
    %25 = vector.broadcast %cst_15 : f32 to vector<16x256xf32>
    %26 = arith.maximumf %24, %25 : vector<16x256xf32>
    %27 = arith.truncf %26 : vector<16x256xf32> to vector<16x256xbf16>
    %c0_16 = arith.constant 0 : index
    %c0_17 = arith.constant 0 : index
    %28 = vector.load %arg8[%c0_16, %c0_17] : memref<256x128xi8, #tpu.memory_space<vmem>>, vector<256x128xi8>
    %29 = arith.sitofp %28 : vector<256x128xi8> to vector<256x128xf32>
    %30 = arith.truncf %29 : vector<256x128xf32> to vector<256x128xbf16>
    %cst_18 = arith.constant dense<0.000000e+00> : vector<16x128xf32>
    %31 = tpu.matmul %27, %30, %cst_18 {dimension_numbers = #tpu.dot_dimension_numbers<[1], [0], [0], [1], [0, 0, 1, 1], [], []>} : vector<16x256xbf16>, vector<256x128xbf16>, vector<16x128xf32> -> vector<16x128xf32>
    %c0_19 = arith.constant 0 : index
    %c0_20 = arith.constant 0 : index
    %32 = vector.load %arg9[%c0_19, %c0_20] : memref<1x128xf32, #tpu.memory_space<vmem>>, vector<1x128xf32>
    %33 = vector.broadcast %32 : vector<1x128xf32> to vector<16x128xf32>
    %34 = arith.mulf %31, %33 : vector<16x128xf32>
    %c0_21 = arith.constant 0 : index
    %c0_22 = arith.constant 0 : index
    %35 = vector.load %arg10[%c0_21, %c0_22] : memref<1x128xf32, #tpu.memory_space<vmem>>, vector<1x128xf32>
    %36 = vector.broadcast %35 : vector<1x128xf32> to vector<16x128xf32>
    %37 = arith.addf %34, %36 : vector<16x128xf32>
    %cst_23 = arith.constant 0.000000e+00 : f32
    %38 = vector.broadcast %cst_23 : f32 to vector<16x128xf32>
    %39 = arith.maximumf %37, %38 : vector<16x128xf32>
    %c0_24 = arith.constant 0 : index
    %c0_25 = arith.constant 0 : index
    %40 = vector.load %arg11[%c0_24, %c0_25] : memref<8x128xbf16, #tpu.memory_space<vmem>>, vector<8x128xbf16>
    %41 = arith.truncf %39 : vector<16x128xf32> to vector<16x128xbf16>
    "tpu.trace_start"() <{level = 10 : i32, message = "ok,bk->ob"}> : () -> ()
    %cst_26 = arith.constant dense<0.000000e+00> : vector<8x16xf32>
    %42 = tpu.matmul %40, %41, %cst_26 {dimension_numbers = #tpu.dot_dimension_numbers<[1], [1], [0], [0], [0, 0, 1, 0], [], []>} : vector<8x128xbf16>, vector<16x128xbf16>, vector<8x16xf32> -> vector<8x16xf32>
    "tpu.trace_stop"() : () -> ()
    %c0_27 = arith.constant 0 : index
    %c0_28 = arith.constant 0 : index
    %43 = vector.load %arg12[%c0_27, %c0_28] : memref<1x1xf32, #tpu.memory_space<vmem>>, vector<1x1xf32>
    %44 = vector.broadcast %43 : vector<1x1xf32> to vector<8x16xf32>
    %45 = arith.addf %42, %44 : vector<8x16xf32>
    %c0_29 = arith.constant 0 : index
    %c0_30 = arith.constant 0 : index
    %46 = vector.load %arg13[%c0_29, %c0_30] : memref<8x16xf32, #tpu.memory_space<vmem>>, vector<8x16xf32>
    tpu.vector_store %arg13[%c0_29, %c0_30], %45 {strides = array<i32>} : memref<8x16xf32, #tpu.memory_space<vmem>>, vector<8x16xf32>,
    return
  }
  func.func @transform_0(%arg0: i32) -> (i32, i32) {
    %c0_i32 = arith.constant 0 : i32
    %c0_i32_0 = arith.constant 0 : i32
    return %arg0, %c0_i32 : i32, i32
  }
  func.func @transform_1(%arg0: i32) -> (i32, i32) {
    %c0_i32 = arith.constant 0 : i32
    %c0_i32_0 = arith.constant 0 : i32
    %c0_i32_1 = arith.constant 0 : i32
    return %c0_i32, %c0_i32_0 : i32, i32
  }
  func.func @transform_2(%arg0: i32) -> (i32, i32) {
    %c0_i32 = arith.constant 0 : i32
    %c0_i32_0 = arith.constant 0 : i32
    %c0_i32_1 = arith.constant 0 : i32
    return %c0_i32, %c0_i32_0 : i32, i32
  }
  func.func @transform_3(%arg0: i32) -> (i32, i32) {
    %c0_i32 = arith.constant 0 : i32
    %c0_i32_0 = arith.constant 0 : i32
    %c0_i32_1 = arith.constant 0 : i32
    return %c0_i32, %c0_i32_0 : i32, i32
  }
  func.func @transform_4(%arg0: i32) -> (i32, i32) {
    %c0_i32 = arith.constant 0 : i32
    %c0_i32_0 = arith.constant 0 : i32
    %c0_i32_1 = arith.constant 0 : i32
    return %c0_i32, %c0_i32_0 : i32, i32
  }
  func.func @transform_5(%arg0: i32) -> (i32, i32) {
    %c0_i32 = arith.constant 0 : i32
    %c0_i32_0 = arith.constant 0 : i32
    %c0_i32_1 = arith.constant 0 : i32
    return %c0_i32, %c0_i32_0 : i32, i32
  }
  func.func @transform_6(%arg0: i32) -> (i32, i32) {
    %c0_i32 = arith.constant 0 : i32
    %c0_i32_0 = arith.constant 0 : i32
    %c0_i32_1 = arith.constant 0 : i32
    return %c0_i32, %c0_i32_0 : i32, i32
  }
  func.func @transform_7(%arg0: i32) -> (i32, i32) {
    %c0_i32 = arith.constant 0 : i32
    %c0_i32_0 = arith.constant 0 : i32
    %c0_i32_1 = arith.constant 0 : i32
    return %c0_i32, %c0_i32_0 : i32, i32
  }
  func.func @transform_8(%arg0: i32) -> (i32, i32) {
    %c0_i32 = arith.constant 0 : i32
    %c0_i32_0 = arith.constant 0 : i32
    %c0_i32_1 = arith.constant 0 : i32
    return %c0_i32, %c0_i32_0 : i32, i32
  }
  func.func @transform_9(%arg0: i32) -> (i32, i32) {
    %c0_i32 = arith.constant 0 : i32
    %c0_i32_0 = arith.constant 0 : i32
    %c0_i32_1 = arith.constant 0 : i32
    return %c0_i32, %c0_i32_0 : i32, i32
  }
  func.func @transform_10(%arg0: i32) -> (i32, i32) {
    %c0_i32 = arith.constant 0 : i32
    %c0_i32_0 = arith.constant 0 : i32
    %c0_i32_1 = arith.constant 0 : i32
    return %c0_i32, %c0_i32_0 : i32, i32
  }
  func.func @transform_11(%arg0: i32) -> (i32, i32) {
    %c0_i32 = arith.constant 0 : i32
    %c0_i32_0 = arith.constant 0 : i32
    %c0_i32_1 = arith.constant 0 : i32
    return %c0_i32, %c0_i32_0 : i32, i32
  }
  func.func @transform_12(%arg0: i32) -> (i32, i32) {
    %c0_i32 = arith.constant 0 : i32
    %c0_i32_0 = arith.constant 0 : i32
    return %c0_i32, %arg0 : i32, i32
  }
}

</mosaic_0001>

<llo_original>
// kernel: custom_model_head.1
$region0: #{custom_model_head.1}
  #allocation0 [shape = 'u32[]', space=smem, size = 0x4, offset = 0x4, fixed_abs, tag = 'smem constant byte address 0x4 - core index']
  #allocation1 [shape = 'u32[144,128]{1,0:T(1,128)}', space=vmem, size = 0x12000, scoped, tag = 'internal scratch']
  #allocation2 [shape = 'f32[1,1]{1,0:T(1,128)S(1)}', space=vmem, size = 0x200, scoped, tag = 'scoped memory for custom_model_head.1']
  %s0 = inlined_call_operand.vmem [shape: f32[16,960], index: 0, kind: input, shape index: {}]
  %s1 = inlined_call_operand.hbm [shape: s8[960,512], index: 1, kind: input, shape index: {}]
  %s2 = inlined_call_operand.vmem [shape: f32[1,512], index: 2, kind: input, shape index: {}]
  %s3 = inlined_call_operand.vmem [shape: f32[1,512], index: 3, kind: input, shape index: {}]
  %s4 = inlined_call_operand.hbm [shape: s8[512,256], index: 4, kind: input, shape index: {}]
  %s5 = inlined_call_operand.vmem [shape: f32[1,256], index: 5, kind: input, shape index: {}]
  %s6 = inlined_call_operand.vmem [shape: f32[1,256], index: 6, kind: input, shape index: {}]
  %s7 = inlined_call_operand.vmem [shape: s8[256,128], index: 7, kind: input, shape index: {}]
  %s8 = inlined_call_operand.vmem [shape: f32[1,128], index: 8, kind: input, shape index: {}]
  %s9 = inlined_call_operand.vmem [shape: f32[1,128], index: 9, kind: input, shape index: {}]
  %s10 = inlined_call_operand.vmem [shape: bf16[8,128], index: 10, kind: input, shape index: {}]
  %s11 = inlined_call_operand.<no memory space> [shape: f32[1,1], index: 11, kind: input, shape index: {}]
  %s12 = inlined_call_operand.vmem [shape: f32[8,16], index: 12, kind: output, shape index: {}]
  %s13 = sld [smem:[#allocation0]]
  $region66: #{custom_model_head.1} parent=0
    _
  %s15 = ssub.s32 1, %s13
  %s16 = scalar_select 0, %s15, %s13
  %v17 = vstv %s11
  %18 = vst [vmem:[#allocation2] sm:$0x1] %v17
  $region1: #{custom_model_head.1} parent=0
    #allocation3 [shape = 'u8[491520]{0}', space=vmem, size = 0x78000, scoped, tag = 'input window, operand 1, single buffered']
    #allocation4 [shape = 's32[1]{0}', space=sflag, size = 0x4, scoped, tag = 'scoped memory for custom_model_head.1']
    #allocation5 [shape = 'u8[131072]{0}', space=vmem, size = 0x20000, scoped, tag = 'input window, operand 4, single buffered']
    #allocation6 [shape = 's32[1]{0}', space=sflag, size = 0x4, scoped, tag = 'scoped memory for custom_model_head.1']
    %19 = vsyncpa [#allocation4], 0
    %20 = vsyncpa [#allocation6], 0
    // Predicated region
    $region2: #{custom_model_head.1} parent=1 // pred_check
      _
    $region3: #{custom_model_head.1} parent=1 // pred_check_branch
      %22 = sbr.rel (0) target = $region5
    $region4: #{custom_model_head.1} parent=1 // pred_region
      _
    $region5: #{custom_model_head.1} parent=1 // pred_fallthru
      _
    // Predicated region
    $region6: #{custom_model_head.1} parent=1 // pred_check
      _
    $region7: #{custom_model_head.1} parent=1 // pred_check_branch
      %24 = sbr.rel (0) target = $region9
    $region8: #{custom_model_head.1} parent=1 // pred_region
      %s26 = ssub.s32 15360, 15360
      %27 = vsyncadd [#allocation4], %s26
      %s28 = sshll.u32 [#allocation3], 4
      %s29 = int_to_ptr.vmem [resolvable:$true] %s28
      %34 = dma.hbm_to_vmem [thread:$0]  %s1, 15360, %s29, [#allocation4], 512, 512, 32
    $region9: #{custom_model_head.1} parent=1 // pred_fallthru
      _
    // Predicated region
    $region10: #{custom_model_head.1} parent=1 // pred_check
      _
    $region11: #{custom_model_head.1} parent=1 // pred_check_branch
      %36 = sbr.rel (0) target = $region13
    $region12: #{custom_model_head.1} parent=1 // pred_region
      _
    $region13: #{custom_model_head.1} parent=1 // pred_fallthru
      _
    // Predicated region
    $region14: #{custom_model_head.1} parent=1 // pred_check
      _
    $region15: #{custom_model_head.1} parent=1 // pred_check_branch
      %38 = sbr.rel (0) target = $region17
    $region16: #{custom_model_head.1} parent=1 // pred_region
      _
    $region17: #{custom_model_head.1} parent=1 // pred_fallthru
      _
    // Predicated region
    $region18: #{custom_model_head.1} parent=1 // pred_check
      _
    $region19: #{custom_model_head.1} parent=1 // pred_check_branch
      %40 = sbr.rel (0) target = $region21
    $region20: #{custom_model_head.1} parent=1 // pred_region
      %s42 = ssub.s32 4096, 4096
      %43 = vsyncadd [#allocation6], %s42
      %s44 = sshll.u32 [#allocation5], 4
      %s45 = int_to_ptr.vmem [resolvable:$true] %s44
      %50 = dma.hbm_to_vmem [thread:$0]  %s4, 4096, %s45, [#allocation6], 256, 256, 16
    $region21: #{custom_model_head.1} parent=1 // pred_fallthru
      _
    // Predicated region
    $region22: #{custom_model_head.1} parent=1 // pred_check
      _
    $region23: #{custom_model_head.1} parent=1 // pred_check_branch
      %52 = sbr.rel (0) target = $region25
    $region24: #{custom_model_head.1} parent=1 // pred_region
      _
    $region25: #{custom_model_head.1} parent=1 // pred_fallthru
      _
    // Predicated region
    $region26: #{custom_model_head.1} parent=1 // pred_check
      _
    $region27: #{custom_model_head.1} parent=1 // pred_check_branch
      %54 = sbr.rel (0) target = $region29
    $region28: #{custom_model_head.1} parent=1 // pred_region
      _
    $region29: #{custom_model_head.1} parent=1 // pred_fallthru
      _
    // Predicated region
    $region30: #{custom_model_head.1} parent=1 // pred_check
      _
    $region31: #{custom_model_head.1} parent=1 // pred_check_branch
      %56 = sbr.rel (0) target = $region33
    $region32: #{custom_model_head.1} parent=1 // pred_region
      _
    $region33: #{custom_model_head.1} parent=1 // pred_fallthru
      _
    // Predicated region
    $region34: #{custom_model_head.1} parent=1 // pred_check
      _
    $region35: #{custom_model_head.1} parent=1 // pred_check_branch
      %58 = sbr.rel (0) target = $region37
    $region36: #{custom_model_head.1} parent=1 // pred_region
      _
    $region37: #{custom_model_head.1} parent=1 // pred_fallthru
      _
    // Predicated region
    $region38: #{custom_model_head.1} parent=1 // pred_check
      _
    $region39: #{custom_model_head.1} parent=1 // pred_check_branch
      %60 = sbr.rel (0) target = $region41
    $region40: #{custom_model_head.1} parent=1 // pred_region
      _
    $region41: #{custom_model_head.1} parent=1 // pred_fallthru
      _
    // Predicated region
    $region42: #{custom_model_head.1} parent=1 // pred_check
      _
    $region43: #{custom_model_head.1} parent=1 // pred_check_branch
      %62 = sbr.rel (0) target = $region45
    $region44: #{custom_model_head.1} parent=1 // pred_region
      _
    $region45: #{custom_model_head.1} parent=1 // pred_fallthru
      _
    // Predicated region
    $region46: #{custom_model_head.1} parent=1 // pred_check
      _
    $region47: #{custom_model_head.1} parent=1 // pred_check_branch
      %64 = sbr.rel (0) target = $region49
    $region48: #{custom_model_head.1} parent=1 // pred_region
      _
    $region49: #{custom_model_head.1} parent=1 // pred_fallthru
      _
    // Predicated region
    $region50: #{custom_model_head.1} parent=1 // pred_check
      _
    $region51: #{custom_model_head.1} parent=1 // pred_check_branch
      %66 = sbr.rel (0) target = $region53
    $region52: #{custom_model_head.1} parent=1 // pred_region
      %67 = dma.done [#allocation4], 15360
    $region53: #{custom_model_head.1} parent=1 // pred_fallthru
      _
    // Predicated region
    $region54: #{custom_model_head.1} parent=1 // pred_check
      _
    $region55: #{custom_model_head.1} parent=1 // pred_check_branch
      %69 = sbr.rel (0) target = $region57
    $region56: #{custom_model_head.1} parent=1 // pred_region
      %70 = dma.done [#allocation6], 4096
    $region57: #{custom_model_head.1} parent=1 // pred_fallthru
      _
    %v72 = vld [vmem:[%s0] sm:$0xff]
    %v73 = vld [vmem:[%s0 + $0x8] sm:$0xff]
    %v74 = vld [vmem:[%s0 + $0x10] sm:$0xff]
    %v75 = vld [vmem:[%s0 + $0x18] sm:$0xff]
    %v76 = vld [vmem:[%s0 + $0x20] sm:$0xff]
    %v77 = vld [vmem:[%s0 + $0x28] sm:$0xff]
    %v78 = vld [vmem:[%s0 + $0x30] sm:$0xff]
    %v79 = vld [vmem:[%s0 + $0x38] sm:$0xff]
    %v80 = vld [vmem:[%s0 + $0x40] sm:$0xff]
    %v81 = vld [vmem:[%s0 + $0x48] sm:$0xff]
    %v82 = vld [vmem:[%s0 + $0x50] sm:$0xff]
    %v83 = vld [vmem:[%s0 + $0x58] sm:$0xff]
    %v84 = vld [vmem:[%s0 + $0x60] sm:$0xff]
    %v85 = vld [vmem:[%s0 + $0x68] sm:$0xff]
    %v86 = vld [vmem:[%s0 + $0x70] sm:$0xff]
    %v87 = vld [vmem:[%s0 + $0x78] sm:$0xff]
    %v88 = vpack.c.bf16 %v80, %v72
    %v89 = vpack.c.bf16 %v81, %v73
    %v90 = vpack.c.bf16 %v82, %v74
    %v91 = vpack.c.bf16 %v83, %v75
    %v92 = vpack.c.bf16 %v84, %v76
    %v93 = vpack.c.bf16 %v85, %v77
    %v94 = vpack.c.bf16 %v86, %v78
    %v95 = vpack.c.bf16 %v87, %v79
    %v96 = vld [vmem:[#allocation3] sm:$0xff]
    %v97 = vld [vmem:[#allocation3 + $0x8] sm:$0xff]
    %v98 = vld [vmem:[#allocation3 + $0x10] sm:$0xff]
    %v99 = vld [vmem:[#allocation3 + $0x18] sm:$0xff]
    %v100 = vld [vmem:[#allocation3 + $0x20] sm:$0xff]
    %v101 = vld [vmem:[#allocation3 + $0x28] sm:$0xff]
    %v102 = vld [vmem:[#allocation3 + $0x30] sm:$0xff]
    %v103 = vld [vmem:[#allocation3 + $0x38] sm:$0xff]
    %v104 = vld [vmem:[#allocation3 + $0x40] sm:$0xff]
    %v105 = vld [vmem:[#allocation3 + $0x48] sm:$0xff]
    %v106 = vld [vmem:[#allocation3 + $0x50] sm:$0xff]
    %v107 = vld [vmem:[#allocation3 + $0x58] sm:$0xff]
    %v108 = vld [vmem:[#allocation3 + $0x60] sm:$0xff]
    %v109 = vld [vmem:[#allocation3 + $0x68] sm:$0xff]
    %v110 = vld [vmem:[#allocation3 + $0x70] sm:$0xff]
    %v111 = vld [vmem:[#allocation3 + $0x78] sm:$0xff]
    %v112 = vld [vmem:[#allocation3 + $0x80] sm:$0xff]
    %v113 = vld [vmem:[#allocation3 + $0x88] sm:$0xff]
    %v114 = vld [vmem:[#allocation3 + $0x90] sm:$0xff]
    %v115 = vld [vmem:[#allocation3 + $0x98] sm:$0xff]
    %v116 = vld [vmem:[#allocation3 + $0xa0] sm:$0xff]
    %v117 = vld [vmem:[#allocation3 + $0xa8] sm:$0xff]
    %v118 = vld [vmem:[#allocation3 + $0xb0] sm:$0xff]
    %v119 = vld [vmem:[#allocation3 + $0xb8] sm:$0xff]
    %v120 = vld [vmem:[#allocation3 + $0xc0] sm:$0xff]
    %v121 = vld [vmem:[#allocation3 + $0xc8] sm:$0xff]
    %v122 = vld [vmem:[#allocation3 + $0xd0] sm:$0xff]
    %v123 = vld [vmem:[#allocation3 + $0xd8] sm:$0xff]
    %v124 = vld [vmem:[#allocation3 + $0xe0] sm:$0xff]
    %v125 = vld [vmem:[#allocation3 + $0xe8] sm:$0xff]
    %v126 = vld [vmem:[#allocation3 + $0xf0] sm:$0xff]
    %v127 = vld [vmem:[#allocation3 + $0xf8] sm:$0xff]
    %v128 = vld [vmem:[#allocation3 + $0x100] sm:$0xff]
    %v129 = vld [vmem:[#allocation3 + $0x108] sm:$0xff]
    %v130 = vld [vmem:[#allocation3 + $0x110] sm:$0xff]
    %v131 = vld [vmem:[#allocation3 + $0x118] sm:$0xff]
    %v132 = vld [vmem:[#allocation3 + $0x120] sm:$0xff]
    %v133 = vld [vmem:[#allocation3 + $0x128] sm:$0xff]
    %v134 = vld [vmem:[#allocation3 + $0x130] sm:$0xff]
    %v135 = vld [vmem:[#allocation3 + $0x138] sm:$0xff]
    %v136 = vld [vmem:[#allocation3 + $0x140] sm:$0xff]
    %v137 = vld [vmem:[#allocation3 + $0x148] sm:$0xff]
    %v138 = vld [vmem:[#allocation3 + $0x150] sm:$0xff]
    %v139 = vld [vmem:[#allocation3 + $0x158] sm:$0xff]
    %v140 = vld [vmem:[#allocation3 + $0x160] sm:$0xff]
    %v141 = vld [vmem:[#allocation3 + $0x168] sm:$0xff]
    %v142 = vld [vmem:[#allocation3 + $0x170] sm:$0xff]
    %v143 = vld [vmem:[#allocation3 + $0x178] sm:$0xff]
    %v144 = vld [vmem:[#allocation3 + $0x180] sm:$0xff]
    %v145 = vld [vmem:[#allocation3 + $0x188] sm:$0xff]
    %v146 = vld [vmem:[#allocation3 + $0x190] sm:$0xff]
    %v147 = vld [vmem:[#allocation3 + $0x198] sm:$0xff]
    %v148 = vld [vmem:[#allocation3 + $0x1a0] sm:$0xff]
    %v149 = vld [vmem:[#allocation3 + $0x1a8] sm:$0xff]
    %v150 = vld [vmem:[#allocation3 + $0x1b0] sm:$0xff]
    %v151 = vld [vmem:[#allocation3 + $0x1b8] sm:$0xff]
    %v152 = vld [vmem:[#allocation3 + $0x1c0] sm:$0xff]
    %v153 = vld [vmem:[#allocation3 + $0x1c8] sm:$0xff]
    %v154 = vld [vmem:[#allocation3 + $0x1d0] sm:$0xff]
    %v155 = vld [vmem:[#allocation3 + $0x1d8] sm:$0xff]
    %v156 = vld [vmem:[#allocation3 + $0x1e0] sm:$0xff]
    %v157 = vld [vmem:[#allocation3 + $0x1e8] sm:$0xff]
    %v158 = vld [vmem:[#allocation3 + $0x1f0] sm:$0xff]
    %v159 = vld [vmem:[#allocation3 + $0x1f8] sm:$0xff]
    %v160 = vld [vmem:[#allocation3 + $0x200] sm:$0xff]
    %v161 = vld [vmem:[#allocation3 + $0x208] sm:$0xff]
    %v162 = vld [vmem:[#allocation3 + $0x210] sm:$0xff]
    %v163 = vld [vmem:[#allocation3 + $0x218] sm:$0xff]
    %v164 = vld [vmem:[#allocation3 + $0x220] sm:$0xff]
    %v165 = vld [vmem:[#allocation3 + $0x228] sm:$0xff]
    %v166 = vld [vmem:[#allocation3 + $0x230] sm:$0xff]
    %v167 = vld [vmem:[#allocation3 + $0x238] sm:$0xff]
    %v168 = vld [vmem:[#allocation3 + $0x240] sm:$0xff]
    %v169 = vld [vmem:[#allocation3 + $0x248] sm:$0xff]
    %v170 = vld [vmem:[#allocation3 + $0x250] sm:$0xff]
    %v171 = vld [vmem:[#allocation3 + $0x258] sm:$0xff]
    %v172 = vld [vmem:[#allocation3 + $0x260] sm:$0xff]
    %v173 = vld [vmem:[#allocation3 + $0x268] sm:$0xff]
    %v174 = vld [vmem:[#allocation3 + $0x270] sm:$0xff]
    %v175 = vld [vmem:[#allocation3 + $0x278] sm:$0xff]
    %v176 = vld [vmem:[#allocation3 + $0x280] sm:$0xff]
    %v177 = vld [vmem:[#allocation3 + $0x288] sm:$0xff]
    %v178 = vld [vmem:[#allocation3 + $0x290] sm:$0xff]
    %v179 = vld [vmem:[#allocation3 + $0x298] sm:$0xff]
    %v180 = vld [vmem:[#allocation3 + $0x2a0] sm:$0xff]
    %v181 = vld [vmem:[#allocation3 + $0x2a8] sm:$0xff]
    %v182 = vld [vmem:[#allocation3 + $0x2b0] sm:$0xff]
    %v183 = vld [vmem:[#allocation3 + $0x2b8] sm:$0xff]
    %v184 = vld [vmem:[#allocation3 + $0x2c0] sm:$0xff]
    %v185 = vld [vmem:[#allocation3 + $0x2c8] sm:$0xff]
    %v186 = vld [vmem:[#allocation3 + $0x2d0] sm:$0xff]
    %v187 = vld [vmem:[#allocation3 + $0x2d8] sm:$0xff]
    %v188 = vld [vmem:[#allocation3 + $0x2e0] sm:$0xff]
    %v189 = vld [vmem:[#allocation3 + $0x2e8] sm:$0xff]
    %v190 = vld [vmem:[#allocation3 + $0x2f0] sm:$0xff]
    %v191 = vld [vmem:[#allocation3 + $0x2f8] sm:$0xff]
    %v192 = vld [vmem:[#allocation3 + $0x300] sm:$0xff]
    %v193 = vld [vmem:[#allocation3 + $0x308] sm:$0xff]
    %v194 = vld [vmem:[#allocation3 + $0x310] sm:$0xff]
    %v195 = vld [vmem:[#allocation3 + $0x318] sm:$0xff]
    %v196 = vld [vmem:[#allocation3 + $0x320] sm:$0xff]
    %v197 = vld [vmem:[#allocation3 + $0x328] sm:$0xff]
    %v198 = vld [vmem:[#allocation3 + $0x330] sm:$0xff]
    %v199 = vld [vmem:[#allocation3 + $0x338] sm:$0xff]
    %v200 = vld [vmem:[#allocation3 + $0x340] sm:$0xff]
    %v201 = vld [vmem:[#allocation3 + $0x348] sm:$0xff]
    %v202 = vld [vmem:[#allocation3 + $0x350] sm:$0xff]
    %v203 = vld [vmem:[#allocation3 + $0x358] sm:$0xff]
    %v204 = vld [vmem:[#allocation3 + $0x360] sm:$0xff]
    %v205 = vld [vmem:[#allocation3 + $0x368] sm:$0xff]
    %v206 = vld [vmem:[#allocation3 + $0x370] sm:$0xff]
    %v207 = vld [vmem:[#allocation3 + $0x378] sm:$0xff]
    %v208 = vld [vmem:[#allocation3 + $0x380] sm:$0xff]
    %v209 = vld [vmem:[#allocation3 + $0x388] sm:$0xff]
    %v210 = vld [vmem:[#allocation3 + $0x390] sm:$0xff]
    %v211 = vld [vmem:[#allocation3 + $0x398] sm:$0xff]
    %v212 = vld [vmem:[#allocation3 + $0x3a0] sm:$0xff]
    %v213 = vld [vmem:[#allocation3 + $0x3a8] sm:$0xff]
    %v214 = vld [vmem:[#allocation3 + $0x3b0] sm:$0xff]
    %v215 = vld [vmem:[#allocation3 + $0x3b8] sm:$0xff]
    %v216 = vunpack.c.l.s8.bf16 %v96
    %v217 = vunpack.c.l.s8.bf16 %v97
    %v218 = vunpack.c.l.s8.bf16 %v98
    %v219 = vunpack.c.l.s8.bf16 %v99
    %v220 = vunpack.c.h.s8.bf16 %v96
    %v221 = vunpack.c.h.s8.bf16 %v97
    %v222 = vunpack.c.h.s8.bf16 %v98
    %v223 = vunpack.c.h.s8.bf16 %v99
    %v224 = vunpack.c.l.s8.bf16 %v100
    %v225 = vunpack.c.l.s8.bf16 %v101
    %v226 = vunpack.c.l.s8.bf16 %v102
    %v227 = vunpack.c.l.s8.bf16 %v103
    %v228 = vunpack.c.h.s8.bf16 %v100
    %v229 = vunpack.c.h.s8.bf16 %v101
    %v230 = vunpack.c.h.s8.bf16 %v102
    %v231 = vunpack.c.h.s8.bf16 %v103
    %v232 = vunpack.c.l.s8.bf16 %v104
    %v233 = vunpack.c.l.s8.bf16 %v105
    %v234 = vunpack.c.l.s8.bf16 %v106
    %v235 = vunpack.c.l.s8.bf16 %v107
    %v236 = vunpack.c.h.s8.bf16 %v104
    %v237 = vunpack.c.h.s8.bf16 %v105
    %v238 = vunpack.c.h.s8.bf16 %v106
    %v239 = vunpack.c.h.s8.bf16 %v107
    %v240 = vunpack.c.l.s8.bf16 %v108
    %v241 = vunpack.c.l.s8.bf16 %v109
    %v242 = vunpack.c.l.s8.bf16 %v110
    %v243 = vunpack.c.l.s8.bf16 %v111
    %v244 = vunpack.c.h.s8.bf16 %v108
    %v245 = vunpack.c.h.s8.bf16 %v109
    %v246 = vunpack.c.h.s8.bf16 %v110
    %v247 = vunpack.c.h.s8.bf16 %v111
    %v248 = vunpack.c.l.s8.bf16 %v112
    %v249 = vunpack.c.l.s8.bf16 %v113
    %v250 = vunpack.c.l.s8.bf16 %v114
    %v251 = vunpack.c.l.s8.bf16 %v115
    %v252 = vunpack.c.h.s8.bf16 %v112
    %v253 = vunpack.c.h.s8.bf16 %v113
    %v254 = vunpack.c.h.s8.bf16 %v114
    %v255 = vunpack.c.h.s8.bf16 %v115
    %v256 = vunpack.c.l.s8.bf16 %v116
    %v257 = vunpack.c.l.s8.bf16 %v117
    %v258 = vunpack.c.l.s8.bf16 %v118
    %v259 = vunpack.c.l.s8.bf16 %v119
    %v260 = vunpack.c.h.s8.bf16 %v116
    %v261 = vunpack.c.h.s8.bf16 %v117
    %v262 = vunpack.c.h.s8.bf16 %v118
    %v263 = vunpack.c.h.s8.bf16 %v119
    %v264 = vunpack.c.l.s8.bf16 %v120
    %v265 = vunpack.c.l.s8.bf16 %v121
    %v266 = vunpack.c.l.s8.bf16 %v122
    %v267 = vunpack.c.l.s8.bf16 %v123
    %v268 = vunpack.c.h.s8.bf16 %v120
    %v269 = vunpack.c.h.s8.bf16 %v121
    %v270 = vunpack.c.h.s8.bf16 %v122
    %v271 = vunpack.c.h.s8.bf16 %v123
    %v272 = vunpack.c.l.s8.bf16 %v124
    %v273 = vunpack.c.l.s8.bf16 %v125
    %v274 = vunpack.c.l.s8.bf16 %v126
    %v275 = vunpack.c.l.s8.bf16 %v127
    %v276 = vunpack.c.h.s8.bf16 %v124
    %v277 = vunpack.c.h.s8.bf16 %v125
    %v278 = vunpack.c.h.s8.bf16 %v126
    %v279 = vunpack.c.h.s8.bf16 %v127
    %v280 = vunpack.c.l.s8.bf16 %v128
    %v281 = vunpack.c.l.s8.bf16 %v129
    %v282 = vunpack.c.l.s8.bf16 %v130
    %v283 = vunpack.c.l.s8.bf16 %v131
    %v284 = vunpack.c.h.s8.bf16 %v128
    %v285 = vunpack.c.h.s8.bf16 %v129
    %v286 = vunpack.c.h.s8.bf16 %v130
    %v287 = vunpack.c.h.s8.bf16 %v131
    %v288 = vunpack.c.l.s8.bf16 %v132
    %v289 = vunpack.c.l.s8.bf16 %v133
    %v290 = vunpack.c.l.s8.bf16 %v134
    %v291 = vunpack.c.l.s8.bf16 %v135
    %v292 = vunpack.c.h.s8.bf16 %v132
    %v293 = vunpack.c.h.s8.bf16 %v133
    %v294 = vunpack.c.h.s8.bf16 %v134
    %v295 = vunpack.c.h.s8.bf16 %v135
    %v296 = vunpack.c.l.s8.bf16 %v136
    %v297 = vunpack.c.l.s8.bf16 %v137
    %v298 = vunpack.c.l.s8.bf16 %v138
    %v299 = vunpack.c.l.s8.bf16 %v139
    %v300 = vunpack.c.h.s8.bf16 %v136
    %v301 = vunpack.c.h.s8.bf16 %v137
    %v302 = vunpack.c.h.s8.bf16 %v138
    %v303 = vunpack.c.h.s8.bf16 %v139
    %v304 = vunpack.c.l.s8.bf16 %v140
    %v305 = vunpack.c.l.s8.bf16 %v141
    %v306 = vunpack.c.l.s8.bf16 %v142
    %v307 = vunpack.c.l.s8.bf16 %v143
    %v308 = vunpack.c.h.s8.bf16 %v140
    %v309 = vunpack.c.h.s8.bf16 %v141
    %v310 = vunpack.c.h.s8.bf16 %v142
    %v311 = vunpack.c.h.s8.bf16 %v143
    %v312 = vunpack.c.l.s8.bf16 %v144
    %v313 = vunpack.c.l.s8.bf16 %v145
    %v314 = vunpack.c.l.s8.bf16 %v146
    %v315 = vunpack.c.l.s8.bf16 %v147
    %v316 = vunpack.c.h.s8.bf16 %v144
    %v317 = vunpack.c.h.s8.bf16 %v145
    %v318 = vunpack.c.h.s8.bf16 %v146
    %v319 = vunpack.c.h.s8.bf16 %v147
    %v320 = vunpack.c.l.s8.bf16 %v148
    %v321 = vunpack.c.l.s8.bf16 %v149
    %v322 = vunpack.c.l.s8.bf16 %v150
    %v323 = vunpack.c.l.s8.bf16 %v151
    %v324 = vunpack.c.h.s8.bf16 %v148
    %v325 = vunpack.c.h.s8.bf16 %v149
    %v326 = vunpack.c.h.s8.bf16 %v150
    %v327 = vunpack.c.h.s8.bf16 %v151
    %v328 = vunpack.c.l.s8.bf16 %v152
    %v329 = vunpack.c.l.s8.bf16 %v153
    %v330 = vunpack.c.l.s8.bf16 %v154
    %v331 = vunpack.c.l.s8.bf16 %v155
    %v332 = vunpack.c.h.s8.bf16 %v152
    %v333 = vunpack.c.h.s8.bf16 %v153
    %v334 = vunpack.c.h.s8.bf16 %v154
    %v335 = vunpack.c.h.s8.bf16 %v155
    %v336 = vunpack.c.l.s8.bf16 %v156
    %v337 = vunpack.c.l.s8.bf16 %v157
    %v338 = vunpack.c.l.s8.bf16 %v158
    %v339 = vunpack.c.l.s8.bf16 %v159
    %v340 = vunpack.c.h.s8.bf16 %v156
    %v341 = vunpack.c.h.s8.bf16 %v157
    %v342 = vunpack.c.h.s8.bf16 %v158
    %v343 = vunpack.c.h.s8.bf16 %v159
    %v344 = vunpack.c.l.s8.bf16 %v160
    %v345 = vunpack.c.l.s8.bf16 %v161
    %v346 = vunpack.c.l.s8.bf16 %v162
    %v347 = vunpack.c.l.s8.bf16 %v163
    %v348 = vunpack.c.h.s8.bf16 %v160
    %v349 = vunpack.c.h.s8.bf16 %v161
    %v350 = vunpack.c.h.s8.bf16 %v162
    %v351 = vunpack.c.h.s8.bf16 %v163
    %v352 = vunpack.c.l.s8.bf16 %v164
    %v353 = vunpack.c.l.s8.bf16 %v165
    %v354 = vunpack.c.l.s8.bf16 %v166
    %v355 = vunpack.c.l.s8.bf16 %v167
    %v356 = vunpack.c.h.s8.bf16 %v164
    %v357 = vunpack.c.h.s8.bf16 %v165
    %v358 = vunpack.c.h.s8.bf16 %v166
    %v359 = vunpack.c.h.s8.bf16 %v167
    %v360 = vunpack.c.l.s8.bf16 %v168
    %v361 = vunpack.c.l.s8.bf16 %v169
    %v362 = vunpack.c.l.s8.bf16 %v170
    %v363 = vunpack.c.l.s8.bf16 %v171
    %v364 = vunpack.c.h.s8.bf16 %v168
    %v365 = vunpack.c.h.s8.bf16 %v169
    %v366 = vunpack.c.h.s8.bf16 %v170
    %v367 = vunpack.c.h.s8.bf16 %v171
    %v368 = vunpack.c.l.s8.bf16 %v172
    %v369 = vunpack.c.l.s8.bf16 %v173
    %v370 = vunpack.c.l.s8.bf16 %v174
    %v371 = vunpack.c.l.s8.bf16 %v175
    %v372 = vunpack.c.h.s8.bf16 %v172
    %v373 = vunpack.c.h.s8.bf16 %v173
    %v374 = vunpack.c.h.s8.bf16 %v174
    %v375 = vunpack.c.h.s8.bf16 %v175
    %v376 = vunpack.c.l.s8.bf16 %v176
    %v377 = vunpack.c.l.s8.bf16 %v177
    %v378 = vunpack.c.l.s8.bf16 %v178
    %v379 = vunpack.c.l.s8.bf16 %v179
    %v380 = vunpack.c.h.s8.bf16 %v176
    %v381 = vunpack.c.h.s8.bf16 %v177
    %v382 = vunpack.c.h.s8.bf16 %v178
    %v383 = vunpack.c.h.s8.bf16 %v179
    %v384 = vunpack.c.l.s8.bf16 %v180
    %v385 = vunpack.c.l.s8.bf16 %v181
    %v386 = vunpack.c.l.s8.bf16 %v182
    %v387 = vunpack.c.l.s8.bf16 %v183
    %v388 = vunpack.c.h.s8.bf16 %v180
    %v389 = vunpack.c.h.s8.bf16 %v181
    %v390 = vunpack.c.h.s8.bf16 %v182
    %v391 = vunpack.c.h.s8.bf16 %v183
    %v392 = vunpack.c.l.s8.bf16 %v184
    %v393 = vunpack.c.l.s8.bf16 %v185
    %v394 = vunpack.c.l.s8.bf16 %v186
    %v395 = vunpack.c.l.s8.bf16 %v187
    %v396 = vunpack.c.h.s8.bf16 %v184
    %v397 = vunpack.c.h.s8.bf16 %v185
    %v398 = vunpack.c.h.s8.bf16 %v186
    %v399 = vunpack.c.h.s8.bf16 %v187
    %v400 = vunpack.c.l.s8.bf16 %v188
    %v401 = vunpack.c.l.s8.bf16 %v189
    %v402 = vunpack.c.l.s8.bf16 %v190
    %v403 = vunpack.c.l.s8.bf16 %v191
    %v404 = vunpack.c.h.s8.bf16 %v188
    %v405 = vunpack.c.h.s8.bf16 %v189
    %v406 = vunpack.c.h.s8.bf16 %v190
    %v407 = vunpack.c.h.s8.bf16 %v191
    %v408 = vunpack.c.l.s8.bf16 %v192
    %v409 = vunpack.c.l.s8.bf16 %v193
    %v410 = vunpack.c.l.s8.bf16 %v194
    %v411 = vunpack.c.l.s8.bf16 %v195
    %v412 = vunpack.c.h.s8.bf16 %v192
    %v413 = vunpack.c.h.s8.bf16 %v193
    %v414 = vunpack.c.h.s8.bf16 %v194
    %v415 = vunpack.c.h.s8.bf16 %v195
    %v416 = vunpack.c.l.s8.bf16 %v196
    %v417 = vunpack.c.l.s8.bf16 %v197
    %v418 = vunpack.c.l.s8.bf16 %v198
    %v419 = vunpack.c.l.s8.bf16 %v199
    %v420 = vunpack.c.h.s8.bf16 %v196
    %v421 = vunpack.c.h.s8.bf16 %v197
    %v422 = vunpack.c.h.s8.bf16 %v198
    %v423 = vunpack.c.h.s8.bf16 %v199
    %v424 = vunpack.c.l.s8.bf16 %v200
    %v425 = vunpack.c.l.s8.bf16 %v201
    %v426 = vunpack.c.l.s8.bf16 %v202
    %v427 = vunpack.c.l.s8.bf16 %v203
    %v428 = vunpack.c.h.s8.bf16 %v200
    %v429 = vunpack.c.h.s8.bf16 %v201
    %v430 = vunpack.c.h.s8.bf16 %v202
    %v431 = vunpack.c.h.s8.bf16 %v203
    %v432 = vunpack.c.l.s8.bf16 %v204
    %v433 = vunpack.c.l.s8.bf16 %v205
    %v434 = vunpack.c.l.s8.bf16 %v206
    %v435 = vunpack.c.l.s8.bf16 %v207
    %v436 = vunpack.c.h.s8.bf16 %v204
    %v437 = vunpack.c.h.s8.bf16 %v205
    %v438 = vunpack.c.h.s8.bf16 %v206
    %v439 = vunpack.c.h.s8.bf16 %v207
    %v440 = vunpack.c.l.s8.bf16 %v208
    %v441 = vunpack.c.l.s8.bf16 %v209
    %v442 = vunpack.c.l.s8.bf16 %v210
    %v443 = vunpack.c.l.s8.bf16 %v211
    %v444 = vunpack.c.h.s8.bf16 %v208
    %v445 = vunpack.c.h.s8.bf16 %v209
    %v446 = vunpack.c.h.s8.bf16 %v210
    %v447 = vunpack.c.h.s8.bf16 %v211
    %v448 = vunpack.c.l.s8.bf16 %v212
    %v449 = vunpack.c.l.s8.bf16 %v213
    %v450 = vunpack.c.l.s8.bf16 %v214
    %v451 = vunpack.c.l.s8.bf16 %v215
    %v452 = vunpack.c.h.s8.bf16 %v212
    %v453 = vunpack.c.h.s8.bf16 %v213
    %v454 = vunpack.c.h.s8.bf16 %v214
    %v455 = vunpack.c.h.s8.bf16 %v215
    %vm456 = vcmask 523264
    %v458 = vsel %vm456, %v95, 0
    %460 = vmatprep.subr.bf16.mxu0 %v217
    %461 = vmatpush1.bf16.msra.mxu0 %v216
    %462 = vmatprep.subr.bf16.mxu0 %v221
    %463 = vmatpush1.bf16.msra.mxu0 %v220
    %464 = vmatprep.subr.bf16.mxu0 %v225
    %465 = vmatpush1.bf16.msra.mxu0 %v224
    %466 = vmatprep.subr.bf16.mxu0 %v229
    %467 = vmatpush1.bf16.msra.mxu0 %v228
    %468 = vmatprep.subr.bf16.mxu0 %v233
    %469 = vmatpush1.bf16.msra.mxu0 %v232
    %470 = vmatprep.subr.bf16.mxu0 %v237
    %471 = vmatpush1.bf16.msra.mxu0 %v236
    %472 = vmatprep.subr.bf16.mxu0 %v241
    %473 = vmatpush1.bf16.msra.mxu0 %v240
    %474 = vmatprep.subr.bf16.mxu0 %v245
    %475 = vmatpush1.bf16.msra.mxu0 %v244
    %476 = vmatprep.subr.bf16.mxu0 %v249
    %477 = vmatpush1.bf16.msra.mxu0 %v248
    %478 = vmatprep.subr.bf16.mxu0 %v253
    %479 = vmatpush1.bf16.msra.mxu0 %v252
    %480 = vmatprep.subr.bf16.mxu0 %v257
    %481 = vmatpush1.bf16.msra.mxu0 %v256
    %482 = vmatprep.subr.bf16.mxu0 %v261
    %483 = vmatpush1.bf16.msra.mxu0 %v260
    %484 = vmatprep.subr.bf16.mxu0 %v265
    %485 = vmatpush1.bf16.msra.mxu0 %v264
    %486 = vmatprep.subr.bf16.mxu0 %v269
    %487 = vmatpush1.bf16.msra.mxu0 %v268
    %488 = vmatprep.subr.bf16.mxu0 %v273
    %489 = vmatpush1.bf16.msra.mxu0 %v272
    %490 = vmatprep.subr.bf16.mxu0 %v277
    %491 = vmatpush1.bf16.msra.mxu0 %v276
    %492 = vmatprep.mubr.bf16.mxu0 %v89
    %493 = vmatmul.mubr.bf16.gmra.mrb[0].mxu0 %v88
    %v494 = vpop.f32.mrb[0].mxu0
    %v495 = vadd.f32 0.0, %v494
    %v496 = vpop.f32.mrb[0].mxu0
    %v497 = vadd.f32 0.0, %v496
    %v498 = vpop.f32.mrb[0].mxu0
    %v499 = vadd.f32 0.0, %v498
    %v500 = vpop.f32.mrb[0].mxu0
    %v501 = vadd.f32 0.0, %v500
    %502 = vdwg.mxu0
    %503 = vmatprep.subr.bf16.mxu0 %v281
    %504 = vmatpush1.bf16.msra.mxu0 %v280
    %505 = vmatprep.subr.bf16.mxu0 %v285
    %506 = vmatpush1.bf16.msra.mxu0 %v284
    %507 = vmatprep.subr.bf16.mxu0 %v289
    %508 = vmatpush1.bf16.msra.mxu0 %v288
    %509 = vmatprep.subr.bf16.mxu0 %v293
    %510 = vmatpush1.bf16.msra.mxu0 %v292
    %511 = vmatprep.subr.bf16.mxu0 %v297
    %512 = vmatpush1.bf16.msra.mxu0 %v296
    %513 = vmatprep.subr.bf16.mxu0 %v301
    %514 = vmatpush1.bf16.msra.mxu0 %v300
    %515 = vmatprep.subr.bf16.mxu0 %v305
    %516 = vmatpush1.bf16.msra.mxu0 %v304
    %517 = vmatprep.subr.bf16.mxu0 %v309
    %518 = vmatpush1.bf16.msra.mxu0 %v308
    %519 = vmatprep.subr.bf16.mxu0 %v313
    %520 = vmatpush1.bf16.msra.mxu0 %v312
    %521 = vmatprep.subr.bf16.mxu0 %v317
    %522 = vmatpush1.bf16.msra.mxu0 %v316
    %523 = vmatprep.subr.bf16.mxu0 %v321
    %524 = vmatpush1.bf16.msra.mxu0 %v320
    %525 = vmatprep.subr.bf16.mxu0 %v325
    %526 = vmatpush1.bf16.msra.mxu0 %v324
    %527 = vmatprep.subr.bf16.mxu0 %v329
    %528 = vmatpush1.bf16.msra.mxu0 %v328
    %529 = vmatprep.subr.bf16.mxu0 %v333
    %530 = vmatpush1.bf16.msra.mxu0 %v332
    %531 = vmatprep.subr.bf16.mxu0 %v337
    %532 = vmatpush1.bf16.msra.mxu0 %v336
    %533 = vmatprep.subr.bf16.mxu0 %v341
    %534 = vmatpush1.bf16.msra.mxu0 %v340
    %535 = vmatprep.mubr.bf16.mxu0 %v91
    %536 = vmatmul.mubr.bf16.gmra.mrb[0].mxu0 %v90
    %v537 = vpop.f32.mrb[0].mxu0
    %v538 = vadd.f32 %v495, %v537
    %v539 = vpop.f32.mrb[0].mxu0
    %v540 = vadd.f32 %v497, %v539
    %v541 = vpop.f32.mrb[0].mxu0
    %v542 = vadd.f32 %v499, %v541
    %v543 = vpop.f32.mrb[0].mxu0
    %v544 = vadd.f32 %v501, %v543
    %545 = vdwg.mxu0
    %546 = vmatprep.subr.bf16.mxu0 %v345
    %547 = vmatpush1.bf16.msra.mxu0 %v344
    %548 = vmatprep.subr.bf16.mxu0 %v349
    %549 = vmatpush1.bf16.msra.mxu0 %v348
    %550 = vmatprep.subr.bf16.mxu0 %v353
    %551 = vmatpush1.bf16.msra.mxu0 %v352
    %552 = vmatprep.subr.bf16.mxu0 %v357
    %553 = vmatpush1.bf16.msra.mxu0 %v356
    %554 = vmatprep.subr.bf16.mxu0 %v361
    %555 = vmatpush1.bf16.msra.mxu0 %v360
    %556 = vmatprep.subr.bf16.mxu0 %v365
    %557 = vmatpush1.bf16.msra.mxu0 %v364
    %558 = vmatprep.subr.bf16.mxu0 %v369
    %559 = vmatpush1.bf16.msra.mxu0 %v368
    %560 = vmatprep.subr.bf16.mxu0 %v373
    %561 = vmatpush1.bf16.msra.mxu0 %v372
    %562 = vmatprep.subr.bf16.mxu0 %v377
    %563 = vmatpush1.bf16.msra.mxu0 %v376
    %564 = vmatprep.subr.bf16.mxu0 %v381
    %565 = vmatpush1.bf16.msra.mxu0 %v380
    %566 = vmatprep.subr.bf16.mxu0 %v385
    %567 = vmatpush1.bf16.msra.mxu0 %v384
    %568 = vmatprep.subr.bf16.mxu0 %v389
    %569 = vmatpush1.bf16.msra.mxu0 %v388
    %570 = vmatprep.subr.bf16.mxu0 %v393
    %571 = vmatpush1.bf16.msra.mxu0 %v392
    %572 = vmatprep.subr.bf16.mxu0 %v397
    %573 = vmatpush1.bf16.msra.mxu0 %v396
    %574 = vmatprep.subr.bf16.mxu0 %v401
    %575 = vmatpush1.bf16.msra.mxu0 %v400
    %576 = vmatprep.subr.bf16.mxu0 %v405
    %577 = vmatpush1.bf16.msra.mxu0 %v404
    %578 = vmatprep.mubr.bf16.mxu0 %v93
    %579 = vmatmul.mubr.bf16.gmra.mrb[0].mxu0 %v92
    %v580 = vpop.f32.mrb[0].mxu0
    %v581 = vadd.f32 %v538, %v580
    %v582 = vpop.f32.mrb[0].mxu0
    %v583 = vadd.f32 %v540, %v582
    %v584 = vpop.f32.mrb[0].mxu0
    %v585 = vadd.f32 %v542, %v584
    %v586 = vpop.f32.mrb[0].mxu0
    %v587 = vadd.f32 %v544, %v586
    %588 = vdwg.mxu0
    %589 = vmatprep.subr.bf16.mxu0 %v409
    %590 = vmatpush1.bf16.msra.mxu0 %v408
    %591 = vmatprep.subr.bf16.mxu0 %v413
    %592 = vmatpush1.bf16.msra.mxu0 %v412
    %593 = vmatprep.subr.bf16.mxu0 %v417
    %594 = vmatpush1.bf16.msra.mxu0 %v416
    %595 = vmatprep.subr.bf16.mxu0 %v421
    %596 = vmatpush1.bf16.msra.mxu0 %v420
    %597 = vmatprep.subr.bf16.mxu0 %v425
    %598 = vmatpush1.bf16.msra.mxu0 %v424
    %599 = vmatprep.subr.bf16.mxu0 %v429
    %600 = vmatpush1.bf16.msra.mxu0 %v428
    %601 = vmatprep.subr.bf16.mxu0 %v433
    %602 = vmatpush1.bf16.msra.mxu0 %v432
    %603 = vmatprep.subr.bf16.mxu0 %v437
    %604 = vmatpush1.bf16.msra.mxu0 %v436
    %605 = vmatprep.subr.bf16.mxu0 %v441
    %606 = vmatpush1.bf16.msra.mxu0 %v440
    %607 = vmatprep.subr.bf16.mxu0 %v445
    %608 = vmatpush1.bf16.msra.mxu0 %v444
    %609 = vmatprep.subr.bf16.mxu0 %v449
    %610 = vmatpush1.bf16.msra.mxu0 %v448
    %611 = vmatprep.subr.bf16.mxu0 %v453
    %612 = vmatpush1.bf16.msra.mxu0 %v452
    %613 = vmatprep.subr.bf16.mxu0 0
    %614 = vmatpush1.bf16.msra.mxu0 0
    %615 = vmatprep.subr.bf16.mxu0 0
    %616 = vmatpush1.bf16.msra.mxu0 0
    %617 = vmatprep.subr.bf16.mxu0 0
    %618 = vmatpush1.bf16.msra.mxu0 0
    %619 = vmatprep.subr.bf16.mxu0 0
    %620 = vmatpush1.bf16.msra.mxu0 0
    %621 = vmatprep.mubr.bf16.mxu0 %v458
    %622 = vmatmul.mubr.bf16.gmra.mrb[0].mxu0 %v94
    %v623 = vpop.f32.mrb[0].mxu0
    %v624 = vadd.f32 %v581, %v623
    %v625 = vpop.f32.mrb[0].mxu0
    %v626 = vadd.f32 %v583, %v625
    %v627 = vpop.f32.mrb[0].mxu0
    %v628 = vadd.f32 %v585, %v627
    %v629 = vpop.f32.mrb[0].mxu0
    %v630 = vadd.f32 %v587, %v629
    %631 = vdwg.mxu0
    %632 = vmatprep.subr.bf16.mxu0 %v219
    %633 = vmatpush1.bf16.msra.mxu0 %v218
    %634 = vmatprep.subr.bf16.mxu0 %v223
    %635 = vmatpush1.bf16.msra.mxu0 %v222
    %636 = vmatprep.subr.bf16.mxu0 %v227
    %637 = vmatpush1.bf16.msra.mxu0 %v226
    %638 = vmatprep.subr.bf16.mxu0 %v231
    %639 = vmatpush1.bf16.msra.mxu0 %v230
    %640 = vmatprep.subr.bf16.mxu0 %v235
    %641 = vmatpush1.bf16.msra.mxu0 %v234
    %642 = vmatprep.subr.bf16.mxu0 %v239
    %643 = vmatpush1.bf16.msra.mxu0 %v238
    %644 = vmatprep.subr.bf16.mxu0 %v243
    %645 = vmatpush1.bf16.msra.mxu0 %v242
    %646 = vmatprep.subr.bf16.mxu0 %v247
    %647 = vmatpush1.bf16.msra.mxu0 %v246
    %648 = vmatprep.subr.bf16.mxu0 %v251
    %649 = vmatpush1.bf16.msra.mxu0 %v250
    %650 = vmatprep.subr.bf16.mxu0 %v255
    %651 = vmatpush1.bf16.msra.mxu0 %v254
    %652 = vmatprep.subr.bf16.mxu0 %v259
    %653 = vmatpush1.bf16.msra.mxu0 %v258
    %654 = vmatprep.subr.bf16.mxu0 %v263
    %655 = vmatpush1.bf16.msra.mxu0 %v262
    %656 = vmatprep.subr.bf16.mxu0 %v267
    %657 = vmatpush1.bf16.msra.mxu0 %v266
    %658 = vmatprep.subr.bf16.mxu0 %v271
    %659 = vmatpush1.bf16.msra.mxu0 %v270
    %660 = vmatprep.subr.bf16.mxu0 %v275
    %661 = vmatpush1.bf16.msra.mxu0 %v274
    %662 = vmatprep.subr.bf16.mxu0 %v279
    %663 = vmatpush1.bf16.msra.mxu0 %v278
    %664 = vmatprep.mubr.bf16.mxu0 %v89
    %665 = vmatmul.mubr.bf16.gmra.mrb[0].mxu0 %v88
    %v666 = vpop.f32.mrb[0].mxu0
    %v667 = vadd.f32 0.0, %v666
    %v668 = vpop.f32.mrb[0].mxu0
    %v669 = vadd.f32 0.0, %v668
    %v670 = vpop.f32.mrb[0].mxu0
    %v671 = vadd.f32 0.0, %v670
    %v672 = vpop.f32.mrb[0].mxu0
    %v673 = vadd.f32 0.0, %v672
    %674 = vdwg.mxu0
    %675 = vmatprep.subr.bf16.mxu0 %v283
    %676 = vmatpush1.bf16.msra.mxu0 %v282
    %677 = vmatprep.subr.bf16.mxu0 %v287
    %678 = vmatpush1.bf16.msra.mxu0 %v286
    %679 = vmatprep.subr.bf16.mxu0 %v291
    %680 = vmatpush1.bf16.msra.mxu0 %v290
    %681 = vmatprep.subr.bf16.mxu0 %v295
    %682 = vmatpush1.bf16.msra.mxu0 %v294
    %683 = vmatprep.subr.bf16.mxu0 %v299
    %684 = vmatpush1.bf16.msra.mxu0 %v298
    %685 = vmatprep.subr.bf16.mxu0 %v303
    %686 = vmatpush1.bf16.msra.mxu0 %v302
    %687 = vmatprep.subr.bf16.mxu0 %v307
    %688 = vmatpush1.bf16.msra.mxu0 %v306
    %689 = vmatprep.subr.bf16.mxu0 %v311
    %690 = vmatpush1.bf16.msra.mxu0 %v310
    %691 = vmatprep.subr.bf16.mxu0 %v315
    %692 = vmatpush1.bf16.msra.mxu0 %v314
    %693 = vmatprep.subr.bf16.mxu0 %v319
    %694 = vmatpush1.bf16.msra.mxu0 %v318
    %695 = vmatprep.subr.bf16.mxu0 %v323
    %696 = vmatpush1.bf16.msra.mxu0 %v322
    %697 = vmatprep.subr.bf16.mxu0 %v327
    %698 = vmatpush1.bf16.msra.mxu0 %v326
    %699 = vmatprep.subr.bf16.mxu0 %v331
    %700 = vmatpush1.bf16.msra.mxu0 %v330
    %701 = vmatprep.subr.bf16.mxu0 %v335
    %702 = vmatpush1.bf16.msra.mxu0 %v334
    %703 = vmatprep.subr.bf16.mxu0 %v339
    %704 = vmatpush1.bf16.msra.mxu0 %v338
    %705 = vmatprep.subr.bf16.mxu0 %v343
    %706 = vmatpush1.bf16.msra.mxu0 %v342
    %707 = vmatprep.mubr.bf16.mxu0 %v91
    %708 = vmatmul.mubr.bf16.gmra.mrb[0].mxu0 %v90
    %v709 = vpop.f32.mrb[0].mxu0
    %v710 = vadd.f32 %v667, %v709
    %v711 = vpop.f32.mrb[0].mxu0
    %v712 = vadd.f32 %v669, %v711
    %v713 = vpop.f32.mrb[0].mxu0
    %v714 = vadd.f32 %v671, %v713
    %v715 = vpop.f32.mrb[0].mxu0
    %v716 = vadd.f32 %v673, %v715
    %717 = vdwg.mxu0
    %718 = vmatprep.subr.bf16.mxu0 %v347
    %719 = vmatpush1.bf16.msra.mxu0 %v346
    %720 = vmatprep.subr.bf16.mxu0 %v351
    %721 = vmatpush1.bf16.msra.mxu0 %v350
    %722 = vmatprep.subr.bf16.mxu0 %v355
    %723 = vmatpush1.bf16.msra.mxu0 %v354
    %724 = vmatprep.subr.bf16.mxu0 %v359
    %725 = vmatpush1.bf16.msra.mxu0 %v358
    %726 = vmatprep.subr.bf16.mxu0 %v363
    %727 = vmatpush1.bf16.msra.mxu0 %v362
    %728 = vmatprep.subr.bf16.mxu0 %v367
    %729 = vmatpush1.bf16.msra.mxu0 %v366
    %730 = vmatprep.subr.bf16.mxu0 %v371
    %731 = vmatpush1.bf16.msra.mxu0 %v370
    %732 = vmatprep.subr.bf16.mxu0 %v375
    %733 = vmatpush1.bf16.msra.mxu0 %v374
    %734 = vmatprep.subr.bf16.mxu0 %v379
    %735 = vmatpush1.bf16.msra.mxu0 %v378
    %736 = vmatprep.subr.bf16.mxu0 %v383
    %737 = vmatpush1.bf16.msra.mxu0 %v382
    %738 = vmatprep.subr.bf16.mxu0 %v387
    %739 = vmatpush1.bf16.msra.mxu0 %v386
    %740 = vmatprep.subr.bf16.mxu0 %v391
    %741 = vmatpush1.bf16.msra.mxu0 %v390
    %742 = vmatprep.subr.bf16.mxu0 %v395
    %743 = vmatpush1.bf16.msra.mxu0 %v394
    %744 = vmatprep.subr.bf16.mxu0 %v399
    %745 = vmatpush1.bf16.msra.mxu0 %v398
    %746 = vmatprep.subr.bf16.mxu0 %v403
    %747 = vmatpush1.bf16.msra.mxu0 %v402
    %748 = vmatprep.subr.bf16.mxu0 %v407
    %749 = vmatpush1.bf16.msra.mxu0 %v406
    %750 = vmatprep.mubr.bf16.mxu0 %v93
    %751 = vmatmul.mubr.bf16.gmra.mrb[0].mxu0 %v92
    %v752 = vpop.f32.mrb[0].mxu0
    %v753 = vadd.f32 %v710, %v752
    %v754 = vpop.f32.mrb[0].mxu0
    %v755 = vadd.f32 %v712, %v754
    %v756 = vpop.f32.mrb[0].mxu0
    %v757 = vadd.f32 %v714, %v756
    %v758 = vpop.f32.mrb[0].mxu0
    %v759 = vadd.f32 %v716, %v758
    %760 = vdwg.mxu0
    %761 = vmatprep.subr.bf16.mxu0 %v411
    %762 = vmatpush1.bf16.msra.mxu0 %v410
    %763 = vmatprep.subr.bf16.mxu0 %v415
    %764 = vmatpush1.bf16.msra.mxu0 %v414
    %765 = vmatprep.subr.bf16.mxu0 %v419
    %766 = vmatpush1.bf16.msra.mxu0 %v418
    %767 = vmatprep.subr.bf16.mxu0 %v423
    %768 = vmatpush1.bf16.msra.mxu0 %v422
    %769 = vmatprep.subr.bf16.mxu0 %v427
    %770 = vmatpush1.bf16.msra.mxu0 %v426
    %771 = vmatprep.subr.bf16.mxu0 %v431
    %772 = vmatpush1.bf16.msra.mxu0 %v430
    %773 = vmatprep.subr.bf16.mxu0 %v435
    %774 = vmatpush1.bf16.msra.mxu0 %v434
    %775 = vmatprep.subr.bf16.mxu0 %v439
    %776 = vmatpush1.bf16.msra.mxu0 %v438
    %777 = vmatprep.subr.bf16.mxu0 %v443
    %778 = vmatpush1.bf16.msra.mxu0 %v442
    %779 = vmatprep.subr.bf16.mxu0 %v447
    %780 = vmatpush1.bf16.msra.mxu0 %v446
    %781 = vmatprep.subr.bf16.mxu0 %v451
    %782 = vmatpush1.bf16.msra.mxu0 %v450
    %783 = vmatprep.subr.bf16.mxu0 %v455
    %784 = vmatpush1.bf16.msra.mxu0 %v454
    %785 = vmatprep.subr.bf16.mxu0 0
    %786 = vmatpush1.bf16.msra.mxu0 0
    %787 = vmatprep.subr.bf16.mxu0 0
    %788 = vmatpush1.bf16.msra.mxu0 0
    %789 = vmatprep.subr.bf16.mxu0 0
    %790 = vmatpush1.bf16.msra.mxu0 0
    %791 = vmatprep.subr.bf16.mxu0 0
    %792 = vmatpush1.bf16.msra.mxu0 0
    %793 = vmatprep.mubr.bf16.mxu0 %v458
    %794 = vmatmul.mubr.bf16.gmra.mrb[0].mxu0 %v94
    %v795 = vpop.f32.mrb[0].mxu0
    %v796 = vadd.f32 %v753, %v795
    %v797 = vpop.f32.mrb[0].mxu0
    %v798 = vadd.f32 %v755, %v797
    %v799 = vpop.f32.mrb[0].mxu0
    %v800 = vadd.f32 %v757, %v799
    %v801 = vpop.f32.mrb[0].mxu0
    %v802 = vadd.f32 %v759, %v801
    %803 = vdwg.mxu0
    %v804 = vld [vmem:[%s2] sm:$0xf]
    %v806 = vlaneseq
    %v807 = vshrl.u32 %v806, 7
    %v808 = vsub.s32 0, %v807
    %v809 = vrot.slane %v804, %v808
    %v810 = vlaneseq
    %v811 = vshrl.u32 %v810, 7
    %v812 = vsub.s32 1, %v811
    %v813 = vrot.slane %v804, %v812
    %v814 = vlaneseq
    %v815 = vshrl.u32 %v814, 7
    %v816 = vsub.s32 2, %v815
    %v817 = vrot.slane %v804, %v816
    %v818 = vlaneseq
    %v819 = vshrl.u32 %v818, 7
    %v820 = vsub.s32 3, %v819
    %v821 = vrot.slane %v804, %v820
    %v826 = vmul.f32 %v624, %v809
    %v827 = vmul.f32 %v626, %v813
    %v828 = vmul.f32 %v796, %v817
    %v829 = vmul.f32 %v798, %v821
    %v830 = vmul.f32 %v628, %v809
    %v831 = vmul.f32 %v630, %v813
    %v832 = vmul.f32 %v800, %v817
    %v833 = vmul.f32 %v802, %v821
    %v834 = vld [vmem:[%s3] sm:$0xf]
    %v836 = vlaneseq
    %v837 = vshrl.u32 %v836, 7
    %v838 = vsub.s32 0, %v837
    %v839 = vrot.slane %v834, %v838
    %v840 = vlaneseq
    %v841 = vshrl.u32 %v840, 7
    %v842 = vsub.s32 1, %v841
    %v843 = vrot.slane %v834, %v842
    %v844 = vlaneseq
    %v845 = vshrl.u32 %v844, 7
    %v846 = vsub.s32 2, %v845
    %v847 = vrot.slane %v834, %v846
    %v848 = vlaneseq
    %v849 = vshrl.u32 %v848, 7
    %v850 = vsub.s32 3, %v849
    %v851 = vrot.slane %v834, %v850
    %v856 = vadd.f32 %v826, %v839
    %v857 = vadd.f32 %v827, %v843
    %v858 = vadd.f32 %v828, %v847
    %v859 = vadd.f32 %v829, %v851
    %v860 = vadd.f32 %v830, %v839
    %v861 = vadd.f32 %v831, %v843
    %v862 = vadd.f32 %v832, %v847
    %v863 = vadd.f32 %v833, %v851
    %v864 = vmax.f32 %v856, 0.0
    %v865 = vmax.f32 %v857, 0.0
    %v866 = vmax.f32 %v858, 0.0
    %v867 = vmax.f32 %v859, 0.0
    %v868 = vmax.f32 %v860, 0.0
    %v869 = vmax.f32 %v861, 0.0
    %v870 = vmax.f32 %v862, 0.0
    %v871 = vmax.f32 %v863, 0.0
    %v872 = vpack.c.bf16 %v868, %v864
    %v873 = vpack.c.bf16 %v869, %v865
    %v874 = vpack.c.bf16 %v870, %v866
    %v875 = vpack.c.bf16 %v871, %v867
    %v876 = vld [vmem:[#allocation5] sm:$0xff]
    %v877 = vld [vmem:[#allocation5 + $0x8] sm:$0xff]
    %v878 = vld [vmem:[#allocation5 + $0x10] sm:$0xff]
    %v879 = vld [vmem:[#allocation5 + $0x18] sm:$0xff]
    %v880 = vld [vmem:[#allocation5 + $0x20] sm:$0xff]
    %v881 = vld [vmem:[#allocation5 + $0x28] sm:$0xff]
    %v882 = vld [vmem:[#allocation5 + $0x30] sm:$0xff]
    %v883 = vld [vmem:[#allocation5 + $0x38] sm:$0xff]
    %v884 = vld [vmem:[#allocation5 + $0x40] sm:$0xff]
    %v885 = vld [vmem:[#allocation5 + $0x48] sm:$0xff]
    %v886 = vld [vmem:[#allocation5 + $0x50] sm:$0xff]
    %v887 = vld [vmem:[#allocation5 + $0x58] sm:$0xff]
    %v888 = vld [vmem:[#allocation5 + $0x60] sm:$0xff]
    %v889 = vld [vmem:[#allocation5 + $0x68] sm:$0xff]
    %v890 = vld [vmem:[#allocation5 + $0x70] sm:$0xff]
    %v891 = vld [vmem:[#allocation5 + $0x78] sm:$0xff]
    %v892 = vld [vmem:[#allocation5 + $0x80] sm:$0xff]
    %v893 = vld [vmem:[#allocation5 + $0x88] sm:$0xff]
    %v894 = vld [vmem:[#allocation5 + $0x90] sm:$0xff]
    %v895 = vld [vmem:[#allocation5 + $0x98] sm:$0xff]
    %v896 = vld [vmem:[#allocation5 + $0xa0] sm:$0xff]
    %v897 = vld [vmem:[#allocation5 + $0xa8] sm:$0xff]
    %v898 = vld [vmem:[#allocation5 + $0xb0] sm:$0xff]
    %v899 = vld [vmem:[#allocation5 + $0xb8] sm:$0xff]
    %v900 = vld [vmem:[#allocation5 + $0xc0] sm:$0xff]
    %v901 = vld [vmem:[#allocation5 + $0xc8] sm:$0xff]
    %v902 = vld [vmem:[#allocation5 + $0xd0] sm:$0xff]
    %v903 = vld [vmem:[#allocation5 + $0xd8] sm:$0xff]
    %v904 = vld [vmem:[#allocation5 + $0xe0] sm:$0xff]
    %v905 = vld [vmem:[#allocation5 + $0xe8] sm:$0xff]
    %v906 = vld [vmem:[#allocation5 + $0xf0] sm:$0xff]
    %v907 = vld [vmem:[#allocation5 + $0xf8] sm:$0xff]
    %v908 = vunpack.c.l.s8.bf16 %v876
    %v909 = vunpack.c.l.s8.bf16 %v877
    %v910 = vunpack.c.h.s8.bf16 %v876
    %v911 = vunpack.c.h.s8.bf16 %v877
    %v912 = vunpack.c.l.s8.bf16 %v878
    %v913 = vunpack.c.l.s8.bf16 %v879
    %v914 = vunpack.c.h.s8.bf16 %v878
    %v915 = vunpack.c.h.s8.bf16 %v879
    %v916 = vunpack.c.l.s8.bf16 %v880
    %v917 = vunpack.c.l.s8.bf16 %v881
    %v918 = vunpack.c.h.s8.bf16 %v880
    %v919 = vunpack.c.h.s8.bf16 %v881
    %v920 = vunpack.c.l.s8.bf16 %v882
    %v921 = vunpack.c.l.s8.bf16 %v883
    %v922 = vunpack.c.h.s8.bf16 %v882
    %v923 = vunpack.c.h.s8.bf16 %v883
    %v924 = vunpack.c.l.s8.bf16 %v884
    %v925 = vunpack.c.l.s8.bf16 %v885
    %v926 = vunpack.c.h.s8.bf16 %v884
    %v927 = vunpack.c.h.s8.bf16 %v885
    %v928 = vunpack.c.l.s8.bf16 %v886
    %v929 = vunpack.c.l.s8.bf16 %v887
    %v930 = vunpack.c.h.s8.bf16 %v886
    %v931 = vunpack.c.h.s8.bf16 %v887
    %v932 = vunpack.c.l.s8.bf16 %v888
    %v933 = vunpack.c.l.s8.bf16 %v889
    %v934 = vunpack.c.h.s8.bf16 %v888
    %v935 = vunpack.c.h.s8.bf16 %v889
    %v936 = vunpack.c.l.s8.bf16 %v890
    %v937 = vunpack.c.l.s8.bf16 %v891
    %v938 = vunpack.c.h.s8.bf16 %v890
    %v939 = vunpack.c.h.s8.bf16 %v891
    %v940 = vunpack.c.l.s8.bf16 %v892
    %v941 = vunpack.c.l.s8.bf16 %v893
    %v942 = vunpack.c.h.s8.bf16 %v892
    %v943 = vunpack.c.h.s8.bf16 %v893
    %v944 = vunpack.c.l.s8.bf16 %v894
    %v945 = vunpack.c.l.s8.bf16 %v895
    %v946 = vunpack.c.h.s8.bf16 %v894
    %v947 = vunpack.c.h.s8.bf16 %v895
    %v948 = vunpack.c.l.s8.bf16 %v896
    %v949 = vunpack.c.l.s8.bf16 %v897
    %v950 = vunpack.c.h.s8.bf16 %v896
    %v951 = vunpack.c.h.s8.bf16 %v897
    %v952 = vunpack.c.l.s8.bf16 %v898
    %v953 = vunpack.c.l.s8.bf16 %v899
    %v954 = vunpack.c.h.s8.bf16 %v898
    %v955 = vunpack.c.h.s8.bf16 %v899
    %v956 = vunpack.c.l.s8.bf16 %v900
    %v957 = vunpack.c.l.s8.bf16 %v901
    %v958 = vunpack.c.h.s8.bf16 %v900
    %v959 = vunpack.c.h.s8.bf16 %v901
    %v960 = vunpack.c.l.s8.bf16 %v902
    %v961 = vunpack.c.l.s8.bf16 %v903
    %v962 = vunpack.c.h.s8.bf16 %v902
    %v963 = vunpack.c.h.s8.bf16 %v903
    %v964 = vunpack.c.l.s8.bf16 %v904
    %v965 = vunpack.c.l.s8.bf16 %v905
    %v966 = vunpack.c.h.s8.bf16 %v904
    %v967 = vunpack.c.h.s8.bf16 %v905
    %v968 = vunpack.c.l.s8.bf16 %v906
    %v969 = vunpack.c.l.s8.bf16 %v907
    %v970 = vunpack.c.h.s8.bf16 %v906
    %v971 = vunpack.c.h.s8.bf16 %v907
    %972 = vmatprep.subr.bf16.mxu0 %v909
    %973 = vmatpush1.bf16.msra.mxu0 %v908
    %974 = vmatprep.subr.bf16.mxu0 %v911
    %975 = vmatpush1.bf16.msra.mxu0 %v910
    %976 = vmatprep.subr.bf16.mxu0 %v913
    %977 = vmatpush1.bf16.msra.mxu0 %v912
    %978 = vmatprep.subr.bf16.mxu0 %v915
    %979 = vmatpush1.bf16.msra.mxu0 %v914
    %980 = vmatprep.subr.bf16.mxu0 %v917
    %981 = vmatpush1.bf16.msra.mxu0 %v916
    %982 = vmatprep.subr.bf16.mxu0 %v919
    %983 = vmatpush1.bf16.msra.mxu0 %v918
    %984 = vmatprep.subr.bf16.mxu0 %v921
    %985 = vmatpush1.bf16.msra.mxu0 %v920
    %986 = vmatprep.subr.bf16.mxu0 %v923
    %987 = vmatpush1.bf16.msra.mxu0 %v922
    %988 = vmatprep.subr.bf16.mxu0 %v925
    %989 = vmatpush1.bf16.msra.mxu0 %v924
    %990 = vmatprep.subr.bf16.mxu0 %v927
    %991 = vmatpush1.bf16.msra.mxu0 %v926
    %992 = vmatprep.subr.bf16.mxu0 %v929
    %993 = vmatpush1.bf16.msra.mxu0 %v928
    %994 = vmatprep.subr.bf16.mxu0 %v931
    %995 = vmatpush1.bf16.msra.mxu0 %v930
    %996 = vmatprep.subr.bf16.mxu0 %v933
    %997 = vmatpush1.bf16.msra.mxu0 %v932
    %998 = vmatprep.subr.bf16.mxu0 %v935
    %999 = vmatpush1.bf16.msra.mxu0 %v934
    %1000 = vmatprep.subr.bf16.mxu0 %v937
    %1001 = vmatpush1.bf16.msra.mxu0 %v936
    %1002 = vmatprep.subr.bf16.mxu0 %v939
    %1003 = vmatpush1.bf16.msra.mxu0 %v938
    %1004 = vmatprep.mubr.bf16.mxu0 %v873
    %1005 = vmatmul.mubr.bf16.gmra.mrb[0].mxu0 %v872
    %v1006 = vpop.f32.mrb[0].mxu0
    %v1007 = vadd.f32 0.0, %v1006
    %v1008 = vpop.f32.mrb[0].mxu0
    %v1009 = vadd.f32 0.0, %v1008
    %v1010 = vpop.f32.mrb[0].mxu0
    %v1011 = vadd.f32 0.0, %v1010
    %v1012 = vpop.f32.mrb[0].mxu0
    %v1013 = vadd.f32 0.0, %v1012
    %1014 = vdwg.mxu0
    %1015 = vmatprep.subr.bf16.mxu0 %v941
    %1016 = vmatpush1.bf16.msra.mxu0 %v940
    %1017 = vmatprep.subr.bf16.mxu0 %v943
    %1018 = vmatpush1.bf16.msra.mxu0 %v942
    %1019 = vmatprep.subr.bf16.mxu0 %v945
    %1020 = vmatpush1.bf16.msra.mxu0 %v944
    %1021 = vmatprep.subr.bf16.mxu0 %v947
    %1022 = vmatpush1.bf16.msra.mxu0 %v946
    %1023 = vmatprep.subr.bf16.mxu0 %v949
    %1024 = vmatpush1.bf16.msra.mxu0 %v948
    %1025 = vmatprep.subr.bf16.mxu0 %v951
    %1026 = vmatpush1.bf16.msra.mxu0 %v950
    %1027 = vmatprep.subr.bf16.mxu0 %v953
    %1028 = vmatpush1.bf16.msra.mxu0 %v952
    %1029 = vmatprep.subr.bf16.mxu0 %v955
    %1030 = vmatpush1.bf16.msra.mxu0 %v954
    %1031 = vmatprep.subr.bf16.mxu0 %v957
    %1032 = vmatpush1.bf16.msra.mxu0 %v956
    %1033 = vmatprep.subr.bf16.mxu0 %v959
    %1034 = vmatpush1.bf16.msra.mxu0 %v958
    %1035 = vmatprep.subr.bf16.mxu0 %v961
    %1036 = vmatpush1.bf16.msra.mxu0 %v960
    %1037 = vmatprep.subr.bf16.mxu0 %v963
    %1038 = vmatpush1.bf16.msra.mxu0 %v962
    %1039 = vmatprep.subr.bf16.mxu0 %v965
    %1040 = vmatpush1.bf16.msra.mxu0 %v964
    %1041 = vmatprep.subr.bf16.mxu0 %v967
    %1042 = vmatpush1.bf16.msra.mxu0 %v966
    %1043 = vmatprep.subr.bf16.mxu0 %v969
    %1044 = vmatpush1.bf16.msra.mxu0 %v968
    %1045 = vmatprep.subr.bf16.mxu0 %v971
    %1046 = vmatpush1.bf16.msra.mxu0 %v970
    %1047 = vmatprep.mubr.bf16.mxu0 %v875
    %1048 = vmatmul.mubr.bf16.gmra.mrb[0].mxu0 %v874
    %v1049 = vpop.f32.mrb[0].mxu0
    %v1050 = vadd.f32 %v1007, %v1049
    %v1051 = vpop.f32.mrb[0].mxu0
    %v1052 = vadd.f32 %v1009, %v1051
    %v1053 = vpop.f32.mrb[0].mxu0
    %v1054 = vadd.f32 %v1011, %v1053
    %v1055 = vpop.f32.mrb[0].mxu0
    %v1056 = vadd.f32 %v1013, %v1055
    %1057 = vdwg.mxu0
    %v1058 = vld [vmem:[%s5] sm:$0x3]
    %v1060 = vlaneseq
    %v1061 = vshrl.u32 %v1060, 7
    %v1062 = vsub.s32 0, %v1061
    %v1063 = vrot.slane %v1058, %v1062
    %v1064 = vlaneseq
    %v1065 = vshrl.u32 %v1064, 7
    %v1066 = vsub.s32 1, %v1065
    %v1067 = vrot.slane %v1058, %v1066
    %v1070 = vmul.f32 %v1050, %v1063
    %v1071 = vmul.f32 %v1052, %v1067
    %v1072 = vmul.f32 %v1054, %v1063
    %v1073 = vmul.f32 %v1056, %v1067
    %v1074 = vld [vmem:[%s6] sm:$0x3]
    %v1076 = vlaneseq
    %v1077 = vshrl.u32 %v1076, 7
    %v1078 = vsub.s32 0, %v1077
    %v1079 = vrot.slane %v1074, %v1078
    %v1080 = vlaneseq
    %v1081 = vshrl.u32 %v1080, 7
    %v1082 = vsub.s32 1, %v1081
    %v1083 = vrot.slane %v1074, %v1082
    %v1086 = vadd.f32 %v1070, %v1079
    %v1087 = vadd.f32 %v1071, %v1083
    %v1088 = vadd.f32 %v1072, %v1079
    %v1089 = vadd.f32 %v1073, %v1083
    %v1090 = vmax.f32 %v1086, 0.0
    %v1091 = vmax.f32 %v1087, 0.0
    %v1092 = vmax.f32 %v1088, 0.0
    %v1093 = vmax.f32 %v1089, 0.0
    %v1094 = vpack.c.bf16 %v1092, %v1090
    %v1095 = vpack.c.bf16 %v1093, %v1091
    %v1096 = vld [vmem:[%s7] sm:$0xff]
    %v1097 = vld [vmem:[%s7 + $0x8] sm:$0xff]
    %v1098 = vld [vmem:[%s7 + $0x10] sm:$0xff]
    %v1099 = vld [vmem:[%s7 + $0x18] sm:$0xff]
    %v1100 = vld [vmem:[%s7 + $0x20] sm:$0xff]
    %v1101 = vld [vmem:[%s7 + $0x28] sm:$0xff]
    %v1102 = vld [vmem:[%s7 + $0x30] sm:$0xff]
    %v1103 = vld [vmem:[%s7 + $0x38] sm:$0xff]
    %v1104 = vunpack.c.l.s8.bf16 %v1096
    %v1105 = vunpack.c.h.s8.bf16 %v1096
    %v1106 = vunpack.c.l.s8.bf16 %v1097
    %v1107 = vunpack.c.h.s8.bf16 %v1097
    %v1108 = vunpack.c.l.s8.bf16 %v1098
    %v1109 = vunpack.c.h.s8.bf16 %v1098
    %v1110 = vunpack.c.l.s8.bf16 %v1099
    %v1111 = vunpack.c.h.s8.bf16 %v1099
    %v1112 = vunpack.c.l.s8.bf16 %v1100
    %v1113 = vunpack.c.h.s8.bf16 %v1100
    %v1114 = vunpack.c.l.s8.bf16 %v1101
    %v1115 = vunpack.c.h.s8.bf16 %v1101
    %v1116 = vunpack.c.l.s8.bf16 %v1102
    %v1117 = vunpack.c.h.s8.bf16 %v1102
    %v1118 = vunpack.c.l.s8.bf16 %v1103
    %v1119 = vunpack.c.h.s8.bf16 %v1103
    %1120 = vmatprep.subr.bf16.mxu0 0
    %1121 = vmatpush1.bf16.msra.mxu0 %v1104
    %1122 = vmatprep.subr.bf16.mxu0 0
    %1123 = vmatpush1.bf16.msra.mxu0 %v1105
    %1124 = vmatprep.subr.bf16.mxu0 0
    %1125 = vmatpush1.bf16.msra.mxu0 %v1106
    %1126 = vmatprep.subr.bf16.mxu0 0
    %1127 = vmatpush1.bf16.msra.mxu0 %v1107
    %1128 = vmatprep.subr.bf16.mxu0 0
    %1129 = vmatpush1.bf16.msra.mxu0 %v1108
    %1130 = vmatprep.subr.bf16.mxu0 0
    %1131 = vmatpush1.bf16.msra.mxu0 %v1109
    %1132 = vmatprep.subr.bf16.mxu0 0
    %1133 = vmatpush1.bf16.msra.mxu0 %v1110
    %1134 = vmatprep.subr.bf16.mxu0 0
    %1135 = vmatpush1.bf16.msra.mxu0 %v1111
    %1136 = vmatprep.subr.bf16.mxu0 0
    %1137 = vmatpush1.bf16.msra.mxu0 %v1112
    %1138 = vmatprep.subr.bf16.mxu0 0
    %1139 = vmatpush1.bf16.msra.mxu0 %v1113
    %1140 = vmatprep.subr.bf16.mxu0 0
    %1141 = vmatpush1.bf16.msra.mxu0 %v1114
    %1142 = vmatprep.subr.bf16.mxu0 0
    %1143 = vmatpush1.bf16.msra.mxu0 %v1115
    %1144 = vmatprep.subr.bf16.mxu0 0
    %1145 = vmatpush1.bf16.msra.mxu0 %v1116
    %1146 = vmatprep.subr.bf16.mxu0 0
    %1147 = vmatpush1.bf16.msra.mxu0 %v1117
    %1148 = vmatprep.subr.bf16.mxu0 0
    %1149 = vmatpush1.bf16.msra.mxu0 %v1118
    %1150 = vmatprep.subr.bf16.mxu0 0
    %1151 = vmatpush1.bf16.msra.mxu0 %v1119
    %1152 = vmatprep.mubr.bf16.mxu0 %v1095
    %1153 = vmatmul.mubr.bf16.gmra.mrb[0].mxu0 %v1094
    %v1154 = vpop.f32.mrb[0].mxu0
    %v1155 = vadd.f32 0.0, %v1154
    %v1156 = vpop.f32.mrb[0].mxu0
    %v1157 = vpop.f32.mrb[0].mxu0
    %v1158 = vadd.f32 0.0, %v1157
    %v1159 = vpop.f32.mrb[0].mxu0
    %1160 = vdwg.mxu0
    %v1161 = vld [vmem:[%s8] sm:$0x1]
    %v1163 = vlaneseq
    %v1164 = vshrl.u32 %v1163, 7
    %v1165 = vsub.s32 0, %v1164
    %v1166 = vrot.slane %v1161, %v1165
    %v1168 = vmul.f32 %v1155, %v1166
    %v1169 = vmul.f32 %v1158, %v1166
    %v1170 = vld [vmem:[%s9] sm:$0x1]
    %v1172 = vlaneseq
    %v1173 = vshrl.u32 %v1172, 7
    %v1174 = vsub.s32 0, %v1173
    %v1175 = vrot.slane %v1170, %v1174
    %v1177 = vadd.f32 %v1168, %v1175
    %v1178 = vadd.f32 %v1169, %v1175
    %v1179 = vmax.f32 %v1177, 0.0
    %v1180 = vmax.f32 %v1178, 0.0
    %v1181 = vld [vmem:[%s10] sm:$0xf]
    %v1182 = vpack.c.bf16 %v1180, %v1179
    %v1183 = vld [vmem:[#allocation2] sm:$0x1]
    %v1185 = vlaneseq
    %v1186 = vshrl.u32 %v1185, 7
    %v1187 = vsub.s32 0, %v1186
    %v1188 = vrot.slane %v1183, %v1187
    %1189 = vset.pattern.permute.xlu0 0
    %1190 = vperm.xlu0 %1189, %v1188
    %v1191 = vpop.permute.xlu0 %1190
    %1193 = vmatprep.subr.bf16.mxu0 0
    %1194 = vmatpush1.bf16.xpose.msra.mxu0 %v1182
    %1195 = vmatprep.subr.bf16.mxu0 0
    %1196 = vmatpush1.bf16.xpose.msra.mxu0 0
    %1197 = vmatprep.subr.bf16.mxu0 0
    %1198 = vmatpush1.bf16.xpose.msra.mxu0 0
    %1199 = vmatprep.subr.bf16.mxu0 0
    %1200 = vmatpush1.bf16.xpose.msra.mxu0 0
    %1201 = vmatprep.subr.bf16.mxu0 0
    %1202 = vmatpush1.bf16.xpose.msra.mxu0 0
    %1203 = vmatprep.subr.bf16.mxu0 0
    %1204 = vmatpush1.bf16.xpose.msra.mxu0 0
    %1205 = vmatprep.subr.bf16.mxu0 0
    %1206 = vmatpush1.bf16.xpose.msra.mxu0 0
    %1207 = vmatprep.subr.bf16.mxu0 0
    %1208 = vmatpush1.bf16.xpose.msra.mxu0 0
    %1209 = vmatprep.subr.bf16.mxu0 0
    %1210 = vmatpush1.bf16.xpose.msra.mxu0 0
    %1211 = vmatprep.subr.bf16.mxu0 0
    %1212 = vmatpush1.bf16.xpose.msra.mxu0 0
    %1213 = vmatprep.subr.bf16.mxu0 0
    %1214 = vmatpush1.bf16.xpose.msra.mxu0 0
    %1215 = vmatprep.subr.bf16.mxu0 0
    %1216 = vmatpush1.bf16.xpose.msra.mxu0 0
    %1217 = vmatprep.subr.bf16.mxu0 0
    %1218 = vmatpush1.bf16.xpose.msra.mxu0 0
    %1219 = vmatprep.subr.bf16.mxu0 0
    %1220 = vmatpush1.bf16.xpose.msra.mxu0 0
    %1221 = vmatprep.subr.bf16.mxu0 0
    %1222 = vmatpush1.bf16.xpose.msra.mxu0 0
    %1223 = vmatprep.subr.bf16.mxu0 0
    %1224 = vmatpush1.bf16.xpose.msra.mxu0 0
    %1225 = vmatprep.mubr.bf16.mxu0 0
    %1226 = vmatmul.mubr.bf16.gmra.mrb[0].mxu0 %v1181
    %v1227 = vpop.f32.mrb[0].mxu0
    %v1228 = vadd.f32 %v1191, %v1227
    %v1229 = vpop.f32.mrb[0].mxu0
    %v1230 = vpop.f32.mrb[0].mxu0
    %v1231 = vpop.f32.mrb[0].mxu0
    %1232 = vdwg.mxu0
    %vm1233 = vcmask 130048
    %1234 = vst.msk [vmem:[%s12] sm:$0xff] %vm1233, %v1228
    // Predicated region
    $region58: #{custom_model_head.1} parent=1 // pred_check
      _
    $region59: #{custom_model_head.1} parent=1 // pred_check_branch
      %1236 = sbr.rel (0) target = $region61
    $region60: #{custom_model_head.1} parent=1 // pred_region
      _
    $region61: #{custom_model_head.1} parent=1 // pred_fallthru
      _
    // Predicated region
    $region62: #{custom_model_head.1} parent=1 // pred_check
      _
    $region63: #{custom_model_head.1} parent=1 // pred_check_branch
      %1238 = sbr.rel (0) target = $region65
    $region64: #{custom_model_head.1} parent=1 // pred_region
      _
    $region65: #{custom_model_head.1} parent=1 // pred_fallthru
      _
    %1239 = vsyncpa [#allocation4], 1
    %1240 = vsyncpa [#allocation6], 1

</llo_original>
